<compile_context>
chip_gen: v7x
topology: tpu7x:2x2x1
jax: 0.10.0
libtpu: 0.0.40
codegen_flags: <defaults>
</compile_context>

<pallas_src>
import jax
import jax.numpy as jnp
import numpy as np
from jax.experimental import pallas as pl
from jax.experimental.pallas import tpu as pltpu

# ---------------------------- configuration ---------------------------------
EMBED = 64
CONTENT = 32
STYLE = EMBED - CONTENT          # 32
NOISE = 16
HID = 48                         # dec_hidden_size
BATCH = 8                        # one f32 sublane tile; any B works (block == full batch dim)
LANE = 128
LN_EPS = 1e-5

# ------------------------- static packing layout -----------------------------
# Weight slab: 11 blocks of 128 rows x 256 lanes, bf16.  Each logical weight sits in the
# top-left corner of its block (rows = true in_dim, cols = true out_dim); fused
# [main | shortcut] weights put the shortcut columns starting at lane 128 so the split after
# the dot is a whole-vreg select.  All padding is zero.
BLK = {
    "mn": 0,            # map_noise Linear(16, 32)
    "i1s_noise": 1,     # interaction fused [main1(16) | shortcut(32)] , rows for noise
    "i1s_style": 2,     #                                               rows for prev_style
    "i2": 3,            # interaction main Linear(16, 16)
    "i3": 4,            # interaction main Linear(16, 32)
    "if": 5,            # interaction final Linear(32, 32)
    "d1s_content": 6,   # dec fused [main1(32) | shortcut(64)] , rows for content
    "d1s_style": 7,     #                                        rows for new_style
    "d2": 8,            # dec main Linear(32, 32)
    "d3": 9,            # dec main Linear(32, 64)
    "head": 10,         # fused heads [h_fc(48) | c_hc(48)] Linear(64, 96)
}
N_WBLK = len(BLK)
W_SLAB_ROWS = N_WBLK * 128       # 1408
W_SLAB_COLS = 2 * LANE           # 256

# Vector slab: one 128-lane f32 row per bias / gamma / beta (zero-padded past its true dim).
_V_LAYOUT = [
    "mn_b", "mn_g", "mn_be",
    "i1_b", "isc_b", "i2_b", "i3_b", "iln_g", "iln_be", "if_b",
    "prev_g", "prev_be", "post_g", "post_be",
    "d1_b", "dsc_b", "d2_b", "d3_b", "dln_g", "dln_be",
    "head_b",
]
ROW = {n: i for i, n in enumerate(_V_LAYOUT)}
V_SLAB_ROWS = 24                 # padded to a multiple of 8


# ------------------------------ Pallas kernel --------------------------------
def latent_decoder_kernel(latent_ref, cs_ref, w_ref, v_ref,
                          head_out_ref, style_out_ref, style_scr):
    t = pl.program_id(0)

    # Initialize the recurrent style carry from the init slab on the first step.
    @pl.when(t == 0)
    def _():
        style_scr[...] = cs_ref[1]

    latent = latent_ref[0]        # (B, 128) f32, lanes 0:16 valid, rest zero
    content = cs_ref[0]           # lanes 0:32 valid
    style = style_scr[...]        # lanes 0:32 valid

    def w_full(name):             # (128, 256) bf16 block
        o = BLK[name] * 128
        return w_ref[o:o + 128, :]

    def w_half(name):             # (128, 128) bf16 block (lane-aligned slice, no shift)
        o = BLK[name] * 128
        return w_ref[o:o + 128, 0:LANE]

    def v(name):                  # (1, 128) f32 row (zero past true dim)
        i = ROW[name]
        return v_ref[i:i + 1, :]

    def dotw(x, wmat):
        # bf16 x bf16 -> f32 accumulate: single MXU pass (perf item 2).
        return jnp.dot(x.astype(jnp.bfloat16), wmat, preferred_element_type=jnp.float32)

    def layernorm(x, g_name, b_name, dim):
        # E[x^2] - mu^2 form: padded lanes are exactly zero, so 128-lane sums divided by the
        # TRUE dim are exact.  Slightly less stable than the two-pass form when |mu| >> sigma;
        # fine here (activations are O(1), test tolerance 5e-2).
        inv = 1.0 / float(dim)
        mu = jnp.sum(x, axis=-1, keepdims=True) * inv
        ex2 = jnp.sum(x * x, axis=-1, keepdims=True) * inv
        var = ex2 - mu * mu
        # gamma/beta padding is zero -> padded lanes of the result stay exactly zero.
        return (x - mu) * jax.lax.rsqrt(var + LN_EPS) * v(g_name) + v(b_name)

    def relu(z):
        return jnp.maximum(z, 0.0)

    # --- map_noise: Linear(16, 32) + LayerNorm(32)
    noise = layernorm(dotw(latent, w_half("mn")) + v("mn_b"), "mn_g", "mn_be", STYLE)

    # --- interaction_fc ('add'): ResNet_Block(64, 32) + LN(32) + Linear(32, 32)
    # concat([noise, prev_style]) eliminated with split-weight dots; main+shortcut fused into
    # one 256-wide dot whose two halves split at the lane-128 vreg boundary (no lane shifts).
    f = dotw(noise, w_full("i1s_noise")) + dotw(style, w_full("i1s_style"))   # (B, 256)
    hm = relu(f[:, 0:LANE] + v("i1_b"))          # main Linear(64,16) + ReLU   (lanes 0:16)
    sc = relu(f[:, LANE:] + v("isc_b"))          # shortcut Linear(64,32)+ReLU (lanes 0:32)
    hm = relu(dotw(hm, w_half("i2")) + v("i2_b"))    # Linear(16,16) + ReLU
    hm = dotw(hm, w_half("i3")) + v("i3_b")          # Linear(16,32)
    t_new = layernorm(hm + sc, "iln_g", "iln_be", STYLE)
    t_new = dotw(t_new, w_half("if")) + v("if_b")    # final Linear(32,32)

    # --- T_layer_norm path
    t_new = layernorm(t_new, "prev_g", "prev_be", STYLE)           # style_norm_prev
    new_style = layernorm(style + t_new, "post_g", "post_be", STYLE)   # style_norm_post

    # --- dec_fc_layers: ResNet_Block(64, 64) + LN(64)
    f = dotw(content, w_full("d1s_content")) + dotw(new_style, w_full("d1s_style"))  # (B, 256)
    hm = relu(f[:, 0:LANE] + v("d1_b"))          # main Linear(64,32) + ReLU   (lanes 0:32)
    sc = relu(f[:, LANE:] + v("dsc_b"))          # shortcut Linear(64,64)+ReLU (lanes 0:64)
    hm = relu(dotw(hm, w_half("d2")) + v("d2_b"))    # Linear(32,32) + ReLU
    hm = dotw(hm, w_half("d3")) + v("d3_b")          # Linear(32,64)
    code = layernorm(hm + sc, "dln_g", "dln_be", EMBED)

    # --- fused heads (h_fc | c_hc): one 128-wide dot, tanh applied with a lane mask.
    head = dotw(code, w_half("head")) + v("head_b")     # lanes 0:48 = h, 48:96 = c, rest 0
    lane_idx = jax.lax.broadcasted_iota(jnp.int32, head.shape, 1)
    head = jnp.where(lane_idx < HID, jnp.tanh(head), head)

    # --- carry + lane-dense full-vreg stores
    style_scr[...] = new_style
    head_out_ref[0] = head
    style_out_ref[0] = new_style


# ------------------------------- wrappers ------------------------------------
def latent_decoder_rollout(latent_seq, prev_content, prev_style, wslab, vslab):
    """Runs T recurrent decoder steps in one kernel launch.

    latent_seq:   (T, B, NOISE) f32   (one noise sample per step)
    prev_content: (B, CONTENT)  f32   (constant across steps)
    prev_style:   (B, STYLE)    f32   (initial style; new_style feeds back each step)

    Returns (h0_seq (T,B,HID), c0_seq (T,B,HID), style_seq (T,B,STYLE)).
    Step 0 is exactly the original module's forward pass.
    """
    T, B, _ = latent_seq.shape
    lat = jnp.pad(latent_seq, ((0, 0), (0, 0), (0, LANE - NOISE)))
    cs = jnp.stack([
        jnp.pad(prev_content, ((0, 0), (0, LANE - CONTENT))),
        jnp.pad(prev_style, ((0, 0), (0, LANE - STYLE))),
    ], axis=0)                                         # (2, B, 128)

    head_out, style_out = pl.pallas_call(
        latent_decoder_kernel,
        grid=(T,),
        out_shape=(
            jax.ShapeDtypeStruct((T, B, LANE), jnp.float32),
            jax.ShapeDtypeStruct((T, B, LANE), jnp.float32),
        ),
        in_specs=[
            pl.BlockSpec((1, B, LANE), lambda t: (t, 0, 0)),              # latent, streamed
            pl.BlockSpec((2, B, LANE), lambda t: (0, 0, 0)),              # content/style init
            pl.BlockSpec((W_SLAB_ROWS, W_SLAB_COLS), lambda t: (0, 0)),   # weights, resident
            pl.BlockSpec((V_SLAB_ROWS, LANE), lambda t: (0, 0)),          # vectors, resident
        ],
        out_specs=(
            pl.BlockSpec((1, B, LANE), lambda t: (t, 0, 0)),
            pl.BlockSpec((1, B, LANE), lambda t: (t, 0, 0)),
        ),
        scratch_shapes=[pltpu.VMEM((B, LANE), jnp.float32)],              # style carry
        compiler_params=pltpu.CompilerParams(dimension_semantics=("arbitrary",)),
    )(lat, cs, wslab, vslab)

    h0_seq = head_out[:, :, 0:HID]
    c0_seq = head_out[:, :, HID:2 * HID]
    style_seq = style_out[:, :, 0:STYLE]
    return h0_seq, c0_seq, style_seq


def latent_decoder_step(latent_input, prev_content, prev_style, wslab, vslab):
    """Original-module API: returns ((h0, c0), new_style) with h0/c0 of shape [1, B, HID]."""
    h0, c0, styles = latent_decoder_rollout(latent_input[None], prev_content, prev_style,
                                            wslab, vslab)
    return (h0, c0), styles[0]


# --------------------------- parameters & packing -----------------------------
def build_raw_params(key):
    """Per-layer params in PyTorch layout semantics (W stored as [in, out], b as [out])."""
    p = {}
    ks = iter(jax.random.split(key, 64))

    def lin(name, din, dout):
        k1, k2 = jax.random.split(next(ks))
        lim = 1.0 / float(np.sqrt(din))
        p[name + "_w"] = jax.random.uniform(k1, (din, dout), jnp.float32, -lim, lim)
        p[name + "_b"] = jax.random.uniform(k2, (dout,), jnp.float32, -lim, lim)

    def lnp(name, d):
        k1, k2 = jax.random.split(next(ks))
        p[name + "_g"] = 1.0 + 0.05 * jax.random.normal(k1, (d,), jnp.float32)
        p[name + "_be"] = 0.05 * jax.random.normal(k2, (d,), jnp.float32)

    lin("mn", NOISE, STYLE); lnp("mn", STYLE)                        # map_noise
    lin("i1", EMBED, STYLE // 2); lin("i2", STYLE // 2, STYLE // 2)  # interaction resnet main
    lin("i3", STYLE // 2, STYLE); lin("isc", EMBED, STYLE)           # + shortcut
    lnp("iln", STYLE)
    lin("if", STYLE, STYLE)                                          # interaction final linear
    lnp("prev", STYLE); lnp("post", STYLE)                           # style_norm_prev/post
    lin("d1", EMBED, EMBED // 2); lin("d2", EMBED // 2, EMBED // 2)  # dec resnet main
    lin("d3", EMBED // 2, EMBED); lin("dsc", EMBED, EMBED)           # + shortcut
    lnp("dln", EMBED)
    lin("h", EMBED, HID); lin("c", EMBED, HID)                       # heads
    return p


def pack_params(p):
    """Fuse + pack the raw params into the bf16 weight slab and f32 vector slab."""
    w = np.zeros((W_SLAB_ROWS, W_SLAB_COLS), np.float32)

    def put(blk_name, mat, col_off=0):
        mat = np.asarray(mat)
        r0 = BLK[blk_name] * 128
        w[r0:r0 + mat.shape[0], col_off:col_off + mat.shape[1]] = mat

    put("mn", p["mn_w"])
    # interaction fused [main1 | shortcut]; concat input = [noise(32) | style(32)]
    put("i1s_noise", np.asarray(p["i1_w"])[:STYLE]);  put("i1s_noise", np.asarray(p["isc_w"])[:STYLE], LANE)
    put("i1s_style", np.asarray(p["i1_w"])[STYLE:]);  put("i1s_style", np.asarray(p["isc_w"])[STYLE:], LANE)
    put("i2", p["i2_w"]); put("i3", p["i3_w"]); put("if", p["if_w"])
    # dec fused [main1 | shortcut]; concat input = [content(32) | new_style(32)]
    put("d1s_content", np.asarray(p["d1_w"])[:CONTENT]); put("d1s_content", np.asarray(p["dsc_w"])[:CONTENT], LANE)
    put("d1s_style",   np.asarray(p["d1_w"])[CONTENT:]); put("d1s_style",   np.asarray(p["dsc_w"])[CONTENT:], LANE)
    put("d2", p["d2_w"]); put("d3", p["d3_w"])
    # fused heads [h | c]
    put("head", p["h_w"]); put("head", p["c_w"], HID)

    vsl = np.zeros((V_SLAB_ROWS, LANE), np.float32)

    def putv(name, vec):
        vec = np.asarray(vec)
        vsl[ROW[name], :vec.shape[0]] = vec

    putv("mn_b", p["mn_b"]); putv("mn_g", p["mn_g"]); putv("mn_be", p["mn_be"])
    putv("i1_b", p["i1_b"]); putv("isc_b", p["isc_b"])
    putv("i2_b", p["i2_b"]); putv("i3_b", p["i3_b"])
    putv("iln_g", p["iln_g"]); putv("iln_be", p["iln_be"])
    putv("if_b", p["if_b"])
    putv("prev_g", p["prev_g"]); putv("prev_be", p["prev_be"])
    putv("post_g", p["post_g"]); putv("post_be", p["post_be"])
    putv("d1_b", p["d1_b"]); putv("dsc_b", p["dsc_b"])
    putv("d2_b", p["d2_b"]); putv("d3_b", p["d3_b"])
    putv("dln_g", p["dln_g"]); putv("dln_be", p["dln_be"])
    putv("head_b", np.concatenate([np.asarray(p["h_b"]), np.asarray(p["c_b"])]))

    return jnp.asarray(w, jnp.bfloat16), jnp.asarray(vsl, jnp.float32)


# ------------------------- pure-JAX reference (unfused) -----------------------
def reference_forward(latent, content, style, p):
    relu = jax.nn.relu

    def linear(x, n):
        return x @ p[n + "_w"] + p[n + "_b"]

    def ln(x, n):
        mu = jnp.mean(x, axis=-1, keepdims=True)
        var = jnp.mean((x - mu) ** 2, axis=-1, keepdims=True)
        return (x - mu) * jax.lax.rsqrt(var + LN_EPS) * p[n + "_g"] + p[n + "_be"]

    noise = ln(linear(latent, "mn"), "mn")
    concat = jnp.concatenate([noise, style], axis=1)
    h = relu(linear(concat, "i1"))
    h = relu(linear(h, "i2"))
    h = linear(h, "i3")
    s = relu(linear(concat, "isc"))
    t = ln(h + s, "iln")
    t = linear(t, "if")
    t = ln(t, "prev")
    new_style = ln(style + t, "post")
    new_code = jnp.concatenate([content, new_style], axis=1)
    h = relu(linear(new_code, "d1"))
    h = relu(linear(h, "d2"))
    h = linear(h, "d3")
    s = relu(linear(new_code, "dsc"))
    code = ln(h + s, "dln")
    h0 = jnp.tanh(linear(code, "h"))
    c0 = linear(code, "c")
    return h0, c0, new_style


def reference_rollout(latent_seq, content, style0, p):
    def step(style, latent):
        h0, c0, new_style = reference_forward(latent, content, style, p)
        return new_style, (h0, c0, new_style)

    _, (h0s, c0s, styles) = jax.lax.scan(step, style0, latent_seq)
    return h0s, c0s, styles


# ----------------------------------- main ------------------------------------
if __name__ == "__main__":
    T = 4
    key = jax.random.PRNGKey(0)
    k_param, k_lat, k_con, k_sty = jax.random.split(key, 4)

    raw_params = build_raw_params(k_param)
    wslab, vslab = pack_params(raw_params)

    latent_seq = jax.random.normal(k_lat, (T, BATCH, NOISE), jnp.float32)
    prev_content = jax.random.normal(k_con, (BATCH, CONTENT), jnp.float32)
    prev_style = jax.random.normal(k_sty, (BATCH, STYLE), jnp.float32)

    # Fused, loop-hoisted kernel (one launch for all T steps).
    h0_seq, c0_seq, style_seq = latent_decoder_rollout(
        latent_seq, prev_content, prev_style, wslab, vslab)
    jax.block_until_ready((h0_seq, c0_seq, style_seq))

    # Original-module API for a single step (T=1) — shape check only.
    (h0_one, c0_one), ns_one = latent_decoder_step(
        latent_seq[0], prev_content, prev_style, wslab, vslab)
    jax.block_until_ready((h0_one, c0_one, ns_one))
    assert h0_one.shape == (1, BATCH, HID) and c0_one.shape == (1, BATCH, HID)
    assert ns_one.shape == (BATCH, STYLE)

    # Pure-f32 JAX reference (unfused math, mirrors the PyTorch module, scanned over T).
    h0_ref, c0_ref, st_ref = jax.jit(reference_rollout)(
        latent_seq, prev_content, prev_style, raw_params)
    jax.block_until_ready((h0_ref, c0_ref, st_ref))

    assert h0_seq.shape == (T, BATCH, HID) and c0_seq.shape == (T, BATCH, HID)
    assert style_seq.shape == (T, BATCH, STYLE)
    # Tolerance 5e-2: kernel uses bf16 weights / bf16 dot operands (perf review item 2);
    # layout or fusion bugs would produce O(1) discrepancies, well above this.
    np.testing.assert_allclose(np.asarray(h0_seq), np.asarray(h0_ref), rtol=5e-2, atol=5e-2)
    np.testing.assert_allclose(np.asarray(c0_seq), np.asarray(c0_ref), rtol=5e-2, atol=5e-2)
    np.testing.assert_allclose(np.asarray(style_seq), np.asarray(st_ref), rtol=5e-2, atol=5e-2)

    print("KERNEL_OK")
</pallas_src>

<mosaic_0001>
module attributes {stable_mosaic.version = 11 : i64} {
  func.func @latent_decoder_kernel(%arg0: i32, %arg1: memref<1x8x128xf32, #tpu.memory_space<vmem>>, %arg2: memref<2x8x128xf32, #tpu.memory_space<vmem>>, %arg3: memref<1408x256xbf16, #tpu.memory_space<vmem>>, %arg4: memref<24x128xf32, #tpu.memory_space<vmem>>, %arg5: memref<1x8x128xf32, #tpu.memory_space<vmem>>, %arg6: memref<1x8x128xf32, #tpu.memory_space<vmem>>, %arg7: memref<8x128xf32, #tpu.memory_space<vmem>>) attributes {dimension_semantics = [#tpu.dimension_semantics<arbitrary>], iteration_bounds = array<i64: 4>, scalar_prefetch = 0 : i64, scratch_operands = 1 : i64, tpu.core_type = #tpu.core_type<tc>, window_params = [{transform_indices = @transform_0, window_bounds = array<i64: 1, 8, 128>}, {pipeline_mode = #tpu.pipeline_mode<synchronous>, transform_indices = @transform_1, window_bounds = array<i64: 2, 8, 128>}, {pipeline_mode = #tpu.pipeline_mode<synchronous>, transform_indices = @transform_2, window_bounds = array<i64: 1408, 256>}, {pipeline_mode = #tpu.pipeline_mode<synchronous>, transform_indices = @transform_3, window_bounds = array<i64: 24, 128>}, {transform_indices = @transform_4, window_bounds = array<i64: 1, 8, 128>}, {transform_indices = @transform_5, window_bounds = array<i64: 1, 8, 128>}]} {
    %c0_i32 = arith.constant 0 : i32
    %0 = arith.cmpi eq, %arg0, %c0_i32 : i32
    %1 = arith.extui %0 : i1 to i32
    %c0_i32_0 = arith.constant 0 : i32
    %2 = arith.cmpi ne, %1, %c0_i32_0 : i32
    scf.if %2 {
      %c1_91 = arith.constant 1 : index
      %c0_92 = arith.constant 0 : index
      %c0_93 = arith.constant 0 : index
      %227 = vector.load %arg2[%c1_91, %c0_92, %c0_93] : memref<2x8x128xf32, #tpu.memory_space<vmem>>, vector<1x8x128xf32>
      %228 = vector.shape_cast %227 : vector<1x8x128xf32> to vector<8x128xf32>
      %c0_94 = arith.constant 0 : index
      %c0_95 = arith.constant 0 : index
      %229 = vector.load %arg7[%c0_94, %c0_95] : memref<8x128xf32, #tpu.memory_space<vmem>>, vector<8x128xf32>
      tpu.vector_store %arg7[%c0_94, %c0_95], %228 {strides = array<i32>} : memref<8x128xf32, #tpu.memory_space<vmem>>, vector<8x128xf32>,
    } else {
    }
    %c0 = arith.constant 0 : index
    %c0_1 = arith.constant 0 : index
    %c0_2 = arith.constant 0 : index
    %3 = vector.load %arg1[%c0, %c0_1, %c0_2] : memref<1x8x128xf32, #tpu.memory_space<vmem>>, vector<1x8x128xf32>
    %4 = vector.shape_cast %3 : vector<1x8x128xf32> to vector<8x128xf32>
    %c0_3 = arith.constant 0 : index
    %c0_4 = arith.constant 0 : index
    %c0_5 = arith.constant 0 : index
    %5 = vector.load %arg2[%c0_3, %c0_4, %c0_5] : memref<2x8x128xf32, #tpu.memory_space<vmem>>, vector<1x8x128xf32>
    %6 = vector.shape_cast %5 : vector<1x8x128xf32> to vector<8x128xf32>
    %c0_6 = arith.constant 0 : index
    %c0_7 = arith.constant 0 : index
    %7 = vector.load %arg7[%c0_6, %c0_7] : memref<8x128xf32, #tpu.memory_space<vmem>>, vector<8x128xf32>
    %c0_8 = arith.constant 0 : index
    %c0_9 = arith.constant 0 : index
    %8 = vector.load %arg3[%c0_8, %c0_9] : memref<1408x256xbf16, #tpu.memory_space<vmem>>, vector<128x128xbf16>
    %9 = arith.truncf %4 : vector<8x128xf32> to vector<8x128xbf16>
    %cst = arith.constant dense<0.000000e+00> : vector<8x128xf32>
    %10 = tpu.matmul %9, %8, %cst {dimension_numbers = #tpu.dot_dimension_numbers<[1], [0], [0], [1], [0, 0, 1, 1], [], []>} : vector<8x128xbf16>, vector<128x128xbf16>, vector<8x128xf32> -> vector<8x128xf32>
    %c0_10 = arith.constant 0 : index
    %c0_11 = arith.constant 0 : index
    %11 = vector.load %arg4[%c0_10, %c0_11] : memref<24x128xf32, #tpu.memory_space<vmem>>, vector<1x128xf32>
    %12 = vector.broadcast %11 : vector<1x128xf32> to vector<8x128xf32>
    %13 = arith.addf %10, %12 : vector<8x128xf32>
    %cst_12 = arith.constant dense<0.000000e+00> : vector<8xf32>
    %14 = vector.multi_reduction <add>, %13, %cst_12 [1] : vector<8x128xf32> to vector<8xf32>
    %15 = vector.shape_cast %14 : vector<8xf32> to vector<8x1xf32>
    %cst_13 = arith.constant 3.125000e-02 : f32
    %16 = vector.broadcast %cst_13 : f32 to vector<8x1xf32>
    %17 = arith.mulf %15, %16 : vector<8x1xf32>
    %18 = arith.mulf %13, %13 : vector<8x128xf32>
    %cst_14 = arith.constant dense<0.000000e+00> : vector<8xf32>
    %19 = vector.multi_reduction <add>, %18, %cst_14 [1] : vector<8x128xf32> to vector<8xf32>
    %20 = vector.shape_cast %19 : vector<8xf32> to vector<8x1xf32>
    %cst_15 = arith.constant 3.125000e-02 : f32
    %21 = vector.broadcast %cst_15 : f32 to vector<8x1xf32>
    %22 = arith.mulf %20, %21 : vector<8x1xf32>
    %23 = arith.mulf %17, %17 : vector<8x1xf32>
    %24 = arith.subf %22, %23 : vector<8x1xf32>
    %25 = vector.broadcast %17 : vector<8x1xf32> to vector<8x128xf32>
    %26 = arith.subf %13, %25 : vector<8x128xf32>
    %cst_16 = arith.constant 9.99999974E-6 : f32
    %27 = vector.broadcast %cst_16 : f32 to vector<8x1xf32>
    %28 = arith.addf %24, %27 : vector<8x1xf32>
    %29 = math.rsqrt %28 : vector<8x1xf32>
    %30 = vector.broadcast %29 : vector<8x1xf32> to vector<8x128xf32>
    %31 = arith.mulf %26, %30 : vector<8x128xf32>
    %c1 = arith.constant 1 : index
    %c0_17 = arith.constant 0 : index
    %32 = vector.load %arg4[%c1, %c0_17] : memref<24x128xf32, #tpu.memory_space<vmem>>, vector<1x128xf32>
    %33 = vector.broadcast %32 : vector<1x128xf32> to vector<8x128xf32>
    %34 = arith.mulf %31, %33 : vector<8x128xf32>
    %c2 = arith.constant 2 : index
    %c0_18 = arith.constant 0 : index
    %35 = vector.load %arg4[%c2, %c0_18] : memref<24x128xf32, #tpu.memory_space<vmem>>, vector<1x128xf32>
    %36 = vector.broadcast %35 : vector<1x128xf32> to vector<8x128xf32>
    %37 = arith.addf %34, %36 : vector<8x128xf32>
    %c128 = arith.constant 128 : index
    %c0_19 = arith.constant 0 : index
    %38 = vector.load %arg3[%c128, %c0_19] : memref<1408x256xbf16, #tpu.memory_space<vmem>>, vector<128x256xbf16>
    %39 = arith.truncf %37 : vector<8x128xf32> to vector<8x128xbf16>
    %cst_20 = arith.constant dense<0.000000e+00> : vector<8x256xf32>
    %40 = tpu.matmul %39, %38, %cst_20 {dimension_numbers = #tpu.dot_dimension_numbers<[1], [0], [0], [1], [0, 0, 1, 1], [], []>} : vector<8x128xbf16>, vector<128x256xbf16>, vector<8x256xf32> -> vector<8x256xf32>
    %c256 = arith.constant 256 : index
    %c0_21 = arith.constant 0 : index
    %41 = vector.load %arg3[%c256, %c0_21] : memref<1408x256xbf16, #tpu.memory_space<vmem>>, vector<128x256xbf16>
    %42 = arith.truncf %7 : vector<8x128xf32> to vector<8x128xbf16>
    %cst_22 = arith.constant dense<0.000000e+00> : vector<8x256xf32>
    %43 = tpu.matmul %42, %41, %cst_22 {dimension_numbers = #tpu.dot_dimension_numbers<[1], [0], [0], [1], [0, 0, 1, 1], [], []>} : vector<8x128xbf16>, vector<128x256xbf16>, vector<8x256xf32> -> vector<8x256xf32>
    %44 = arith.addf %40, %43 : vector<8x256xf32>
    %45 = vector.extract_strided_slice %44 {offsets = [0, 0], sizes = [8, 128], strides = [1, 1]} : vector<8x256xf32> to vector<8x128xf32>
    %c3 = arith.constant 3 : index
    %c0_23 = arith.constant 0 : index
    %46 = vector.load %arg4[%c3, %c0_23] : memref<24x128xf32, #tpu.memory_space<vmem>>, vector<1x128xf32>
    %47 = vector.broadcast %46 : vector<1x128xf32> to vector<8x128xf32>
    %48 = arith.addf %45, %47 : vector<8x128xf32>
    %cst_24 = arith.constant 0.000000e+00 : f32
    %49 = vector.broadcast %cst_24 : f32 to vector<8x128xf32>
    %50 = arith.maximumf %48, %49 : vector<8x128xf32>
    %51 = vector.extract_strided_slice %44 {offsets = [0, 128], sizes = [8, 128], strides = [1, 1]} : vector<8x256xf32> to vector<8x128xf32>
    %c4 = arith.constant 4 : index
    %c0_25 = arith.constant 0 : index
    %52 = vector.load %arg4[%c4, %c0_25] : memref<24x128xf32, #tpu.memory_space<vmem>>, vector<1x128xf32>
    %53 = vector.broadcast %52 : vector<1x128xf32> to vector<8x128xf32>
    %54 = arith.addf %51, %53 : vector<8x128xf32>
    %cst_26 = arith.constant 0.000000e+00 : f32
    %55 = vector.broadcast %cst_26 : f32 to vector<8x128xf32>
    %56 = arith.maximumf %54, %55 : vector<8x128xf32>
    %c384 = arith.constant 384 : index
    %c0_27 = arith.constant 0 : index
    %57 = vector.load %arg3[%c384, %c0_27] : memref<1408x256xbf16, #tpu.memory_space<vmem>>, vector<128x128xbf16>
    %58 = arith.truncf %50 : vector<8x128xf32> to vector<8x128xbf16>
    %cst_28 = arith.constant dense<0.000000e+00> : vector<8x128xf32>
    %59 = tpu.matmul %58, %57, %cst_28 {dimension_numbers = #tpu.dot_dimension_numbers<[1], [0], [0], [1], [0, 0, 1, 1], [], []>} : vector<8x128xbf16>, vector<128x128xbf16>, vector<8x128xf32> -> vector<8x128xf32>
    %c5 = arith.constant 5 : index
    %c0_29 = arith.constant 0 : index
    %60 = vector.load %arg4[%c5, %c0_29] : memref<24x128xf32, #tpu.memory_space<vmem>>, vector<1x128xf32>
    %61 = vector.broadcast %60 : vector<1x128xf32> to vector<8x128xf32>
    %62 = arith.addf %59, %61 : vector<8x128xf32>
    %cst_30 = arith.constant 0.000000e+00 : f32
    %63 = vector.broadcast %cst_30 : f32 to vector<8x128xf32>
    %64 = arith.maximumf %62, %63 : vector<8x128xf32>
    %c512 = arith.constant 512 : index
    %c0_31 = arith.constant 0 : index
    %65 = vector.load %arg3[%c512, %c0_31] : memref<1408x256xbf16, #tpu.memory_space<vmem>>, vector<128x128xbf16>
    %66 = arith.truncf %64 : vector<8x128xf32> to vector<8x128xbf16>
    %cst_32 = arith.constant dense<0.000000e+00> : vector<8x128xf32>
    %67 = tpu.matmul %66, %65, %cst_32 {dimension_numbers = #tpu.dot_dimension_numbers<[1], [0], [0], [1], [0, 0, 1, 1], [], []>} : vector<8x128xbf16>, vector<128x128xbf16>, vector<8x128xf32> -> vector<8x128xf32>
    %c6 = arith.constant 6 : index
    %c0_33 = arith.constant 0 : index
    %68 = vector.load %arg4[%c6, %c0_33] : memref<24x128xf32, #tpu.memory_space<vmem>>, vector<1x128xf32>
    %69 = vector.broadcast %68 : vector<1x128xf32> to vector<8x128xf32>
    %70 = arith.addf %67, %69 : vector<8x128xf32>
    %71 = arith.addf %70, %56 : vector<8x128xf32>
    %cst_34 = arith.constant dense<0.000000e+00> : vector<8xf32>
    %72 = vector.multi_reduction <add>, %71, %cst_34 [1] : vector<8x128xf32> to vector<8xf32>
    %73 = vector.shape_cast %72 : vector<8xf32> to vector<8x1xf32>
    %cst_35 = arith.constant 3.125000e-02 : f32
    %74 = vector.broadcast %cst_35 : f32 to vector<8x1xf32>
    %75 = arith.mulf %73, %74 : vector<8x1xf32>
    %76 = arith.mulf %71, %71 : vector<8x128xf32>
    %cst_36 = arith.constant dense<0.000000e+00> : vector<8xf32>
    %77 = vector.multi_reduction <add>, %76, %cst_36 [1] : vector<8x128xf32> to vector<8xf32>
    %78 = vector.shape_cast %77 : vector<8xf32> to vector<8x1xf32>
    %cst_37 = arith.constant 3.125000e-02 : f32
    %79 = vector.broadcast %cst_37 : f32 to vector<8x1xf32>
    %80 = arith.mulf %78, %79 : vector<8x1xf32>
    %81 = arith.mulf %75, %75 : vector<8x1xf32>
    %82 = arith.subf %80, %81 : vector<8x1xf32>
    %83 = vector.broadcast %75 : vector<8x1xf32> to vector<8x128xf32>
    %84 = arith.subf %71, %83 : vector<8x128xf32>
    %cst_38 = arith.constant 9.99999974E-6 : f32
    %85 = vector.broadcast %cst_38 : f32 to vector<8x1xf32>
    %86 = arith.addf %82, %85 : vector<8x1xf32>
    %87 = math.rsqrt %86 : vector<8x1xf32>
    %88 = vector.broadcast %87 : vector<8x1xf32> to vector<8x128xf32>
    %89 = arith.mulf %84, %88 : vector<8x128xf32>
    %c7 = arith.constant 7 : index
    %c0_39 = arith.constant 0 : index
    %90 = vector.load %arg4[%c7, %c0_39] : memref<24x128xf32, #tpu.memory_space<vmem>>, vector<1x128xf32>
    %91 = vector.broadcast %90 : vector<1x128xf32> to vector<8x128xf32>
    %92 = arith.mulf %89, %91 : vector<8x128xf32>
    %c8 = arith.constant 8 : index
    %c0_40 = arith.constant 0 : index
    %93 = vector.load %arg4[%c8, %c0_40] : memref<24x128xf32, #tpu.memory_space<vmem>>, vector<1x128xf32>
    %94 = vector.broadcast %93 : vector<1x128xf32> to vector<8x128xf32>
    %95 = arith.addf %92, %94 : vector<8x128xf32>
    %c640 = arith.constant 640 : index
    %c0_41 = arith.constant 0 : index
    %96 = vector.load %arg3[%c640, %c0_41] : memref<1408x256xbf16, #tpu.memory_space<vmem>>, vector<128x128xbf16>
    %97 = arith.truncf %95 : vector<8x128xf32> to vector<8x128xbf16>
    %cst_42 = arith.constant dense<0.000000e+00> : vector<8x128xf32>
    %98 = tpu.matmul %97, %96, %cst_42 {dimension_numbers = #tpu.dot_dimension_numbers<[1], [0], [0], [1], [0, 0, 1, 1], [], []>} : vector<8x128xbf16>, vector<128x128xbf16>, vector<8x128xf32> -> vector<8x128xf32>
    %c9 = arith.constant 9 : index
    %c0_43 = arith.constant 0 : index
    %99 = vector.load %arg4[%c9, %c0_43] : memref<24x128xf32, #tpu.memory_space<vmem>>, vector<1x128xf32>
    %100 = vector.broadcast %99 : vector<1x128xf32> to vector<8x128xf32>
    %101 = arith.addf %98, %100 : vector<8x128xf32>
    %cst_44 = arith.constant dense<0.000000e+00> : vector<8xf32>
    %102 = vector.multi_reduction <add>, %101, %cst_44 [1] : vector<8x128xf32> to vector<8xf32>
    %103 = vector.shape_cast %102 : vector<8xf32> to vector<8x1xf32>
    %cst_45 = arith.constant 3.125000e-02 : f32
    %104 = vector.broadcast %cst_45 : f32 to vector<8x1xf32>
    %105 = arith.mulf %103, %104 : vector<8x1xf32>
    %106 = arith.mulf %101, %101 : vector<8x128xf32>
    %cst_46 = arith.constant dense<0.000000e+00> : vector<8xf32>
    %107 = vector.multi_reduction <add>, %106, %cst_46 [1] : vector<8x128xf32> to vector<8xf32>
    %108 = vector.shape_cast %107 : vector<8xf32> to vector<8x1xf32>
    %cst_47 = arith.constant 3.125000e-02 : f32
    %109 = vector.broadcast %cst_47 : f32 to vector<8x1xf32>
    %110 = arith.mulf %108, %109 : vector<8x1xf32>
    %111 = arith.mulf %105, %105 : vector<8x1xf32>
    %112 = arith.subf %110, %111 : vector<8x1xf32>
    %113 = vector.broadcast %105 : vector<8x1xf32> to vector<8x128xf32>
    %114 = arith.subf %101, %113 : vector<8x128xf32>
    %cst_48 = arith.constant 9.99999974E-6 : f32
    %115 = vector.broadcast %cst_48 : f32 to vector<8x1xf32>
    %116 = arith.addf %112, %115 : vector<8x1xf32>
    %117 = math.rsqrt %116 : vector<8x1xf32>
    %118 = vector.broadcast %117 : vector<8x1xf32> to vector<8x128xf32>
    %119 = arith.mulf %114, %118 : vector<8x128xf32>
    %c10 = arith.constant 10 : index
    %c0_49 = arith.constant 0 : index
    %120 = vector.load %arg4[%c10, %c0_49] : memref<24x128xf32, #tpu.memory_space<vmem>>, vector<1x128xf32>
    %121 = vector.broadcast %120 : vector<1x128xf32> to vector<8x128xf32>
    %122 = arith.mulf %119, %121 : vector<8x128xf32>
    %c11 = arith.constant 11 : index
    %c0_50 = arith.constant 0 : index
    %123 = vector.load %arg4[%c11, %c0_50] : memref<24x128xf32, #tpu.memory_space<vmem>>, vector<1x128xf32>
    %124 = vector.broadcast %123 : vector<1x128xf32> to vector<8x128xf32>
    %125 = arith.addf %122, %124 : vector<8x128xf32>
    %126 = arith.addf %7, %125 : vector<8x128xf32>
    %cst_51 = arith.constant dense<0.000000e+00> : vector<8xf32>
    %127 = vector.multi_reduction <add>, %126, %cst_51 [1] : vector<8x128xf32> to vector<8xf32>
    %128 = vector.shape_cast %127 : vector<8xf32> to vector<8x1xf32>
    %cst_52 = arith.constant 3.125000e-02 : f32
    %129 = vector.broadcast %cst_52 : f32 to vector<8x1xf32>
    %130 = arith.mulf %128, %129 : vector<8x1xf32>
    %131 = arith.mulf %126, %126 : vector<8x128xf32>
    %cst_53 = arith.constant dense<0.000000e+00> : vector<8xf32>
    %132 = vector.multi_reduction <add>, %131, %cst_53 [1] : vector<8x128xf32> to vector<8xf32>
    %133 = vector.shape_cast %132 : vector<8xf32> to vector<8x1xf32>
    %cst_54 = arith.constant 3.125000e-02 : f32
    %134 = vector.broadcast %cst_54 : f32 to vector<8x1xf32>
    %135 = arith.mulf %133, %134 : vector<8x1xf32>
    %136 = arith.mulf %130, %130 : vector<8x1xf32>
    %137 = arith.subf %135, %136 : vector<8x1xf32>
    %138 = vector.broadcast %130 : vector<8x1xf32> to vector<8x128xf32>
    %139 = arith.subf %126, %138 : vector<8x128xf32>
    %cst_55 = arith.constant 9.99999974E-6 : f32
    %140 = vector.broadcast %cst_55 : f32 to vector<8x1xf32>
    %141 = arith.addf %137, %140 : vector<8x1xf32>
    %142 = math.rsqrt %141 : vector<8x1xf32>
    %143 = vector.broadcast %142 : vector<8x1xf32> to vector<8x128xf32>
    %144 = arith.mulf %139, %143 : vector<8x128xf32>
    %c12 = arith.constant 12 : index
    %c0_56 = arith.constant 0 : index
    %145 = vector.load %arg4[%c12, %c0_56] : memref<24x128xf32, #tpu.memory_space<vmem>>, vector<1x128xf32>
    %146 = vector.broadcast %145 : vector<1x128xf32> to vector<8x128xf32>
    %147 = arith.mulf %144, %146 : vector<8x128xf32>
    %c13 = arith.constant 13 : index
    %c0_57 = arith.constant 0 : index
    %148 = vector.load %arg4[%c13, %c0_57] : memref<24x128xf32, #tpu.memory_space<vmem>>, vector<1x128xf32>
    %149 = vector.broadcast %148 : vector<1x128xf32> to vector<8x128xf32>
    %150 = arith.addf %147, %149 : vector<8x128xf32>
    %c768 = arith.constant 768 : index
    %c0_58 = arith.constant 0 : index
    %151 = vector.load %arg3[%c768, %c0_58] : memref<1408x256xbf16, #tpu.memory_space<vmem>>, vector<128x256xbf16>
    %152 = arith.truncf %6 : vector<8x128xf32> to vector<8x128xbf16>
    %cst_59 = arith.constant dense<0.000000e+00> : vector<8x256xf32>
    %153 = tpu.matmul %152, %151, %cst_59 {dimension_numbers = #tpu.dot_dimension_numbers<[1], [0], [0], [1], [0, 0, 1, 1], [], []>} : vector<8x128xbf16>, vector<128x256xbf16>, vector<8x256xf32> -> vector<8x256xf32>
    %c896 = arith.constant 896 : index
    %c0_60 = arith.constant 0 : index
    %154 = vector.load %arg3[%c896, %c0_60] : memref<1408x256xbf16, #tpu.memory_space<vmem>>, vector<128x256xbf16>
    %155 = arith.truncf %150 : vector<8x128xf32> to vector<8x128xbf16>
    %cst_61 = arith.constant dense<0.000000e+00> : vector<8x256xf32>
    %156 = tpu.matmul %155, %154, %cst_61 {dimension_numbers = #tpu.dot_dimension_numbers<[1], [0], [0], [1], [0, 0, 1, 1], [], []>} : vector<8x128xbf16>, vector<128x256xbf16>, vector<8x256xf32> -> vector<8x256xf32>
    %157 = arith.addf %153, %156 : vector<8x256xf32>
    %158 = vector.extract_strided_slice %157 {offsets = [0, 0], sizes = [8, 128], strides = [1, 1]} : vector<8x256xf32> to vector<8x128xf32>
    %c14 = arith.constant 14 : index
    %c0_62 = arith.constant 0 : index
    %159 = vector.load %arg4[%c14, %c0_62] : memref<24x128xf32, #tpu.memory_space<vmem>>, vector<1x128xf32>
    %160 = vector.broadcast %159 : vector<1x128xf32> to vector<8x128xf32>
    %161 = arith.addf %158, %160 : vector<8x128xf32>
    %cst_63 = arith.constant 0.000000e+00 : f32
    %162 = vector.broadcast %cst_63 : f32 to vector<8x128xf32>
    %163 = arith.maximumf %161, %162 : vector<8x128xf32>
    %164 = vector.extract_strided_slice %157 {offsets = [0, 128], sizes = [8, 128], strides = [1, 1]} : vector<8x256xf32> to vector<8x128xf32>
    %c15 = arith.constant 15 : index
    %c0_64 = arith.constant 0 : index
    %165 = vector.load %arg4[%c15, %c0_64] : memref<24x128xf32, #tpu.memory_space<vmem>>, vector<1x128xf32>
    %166 = vector.broadcast %165 : vector<1x128xf32> to vector<8x128xf32>
    %167 = arith.addf %164, %166 : vector<8x128xf32>
    %cst_65 = arith.constant 0.000000e+00 : f32
    %168 = vector.broadcast %cst_65 : f32 to vector<8x128xf32>
    %169 = arith.maximumf %167, %168 : vector<8x128xf32>
    %c1024 = arith.constant 1024 : index
    %c0_66 = arith.constant 0 : index
    %170 = vector.load %arg3[%c1024, %c0_66] : memref<1408x256xbf16, #tpu.memory_space<vmem>>, vector<128x128xbf16>
    %171 = arith.truncf %163 : vector<8x128xf32> to vector<8x128xbf16>
    %cst_67 = arith.constant dense<0.000000e+00> : vector<8x128xf32>
    %172 = tpu.matmul %171, %170, %cst_67 {dimension_numbers = #tpu.dot_dimension_numbers<[1], [0], [0], [1], [0, 0, 1, 1], [], []>} : vector<8x128xbf16>, vector<128x128xbf16>, vector<8x128xf32> -> vector<8x128xf32>
    %c16 = arith.constant 16 : index
    %c0_68 = arith.constant 0 : index
    %173 = vector.load %arg4[%c16, %c0_68] : memref<24x128xf32, #tpu.memory_space<vmem>>, vector<1x128xf32>
    %174 = vector.broadcast %173 : vector<1x128xf32> to vector<8x128xf32>
    %175 = arith.addf %172, %174 : vector<8x128xf32>
    %cst_69 = arith.constant 0.000000e+00 : f32
    %176 = vector.broadcast %cst_69 : f32 to vector<8x128xf32>
    %177 = arith.maximumf %175, %176 : vector<8x128xf32>
    %c1152 = arith.constant 1152 : index
    %c0_70 = arith.constant 0 : index
    %178 = vector.load %arg3[%c1152, %c0_70] : memref<1408x256xbf16, #tpu.memory_space<vmem>>, vector<128x128xbf16>
    %179 = arith.truncf %177 : vector<8x128xf32> to vector<8x128xbf16>
    %cst_71 = arith.constant dense<0.000000e+00> : vector<8x128xf32>
    %180 = tpu.matmul %179, %178, %cst_71 {dimension_numbers = #tpu.dot_dimension_numbers<[1], [0], [0], [1], [0, 0, 1, 1], [], []>} : vector<8x128xbf16>, vector<128x128xbf16>, vector<8x128xf32> -> vector<8x128xf32>
    %c17 = arith.constant 17 : index
    %c0_72 = arith.constant 0 : index
    %181 = vector.load %arg4[%c17, %c0_72] : memref<24x128xf32, #tpu.memory_space<vmem>>, vector<1x128xf32>
    %182 = vector.broadcast %181 : vector<1x128xf32> to vector<8x128xf32>
    %183 = arith.addf %180, %182 : vector<8x128xf32>
    %184 = arith.addf %183, %169 : vector<8x128xf32>
    %cst_73 = arith.constant dense<0.000000e+00> : vector<8xf32>
    %185 = vector.multi_reduction <add>, %184, %cst_73 [1] : vector<8x128xf32> to vector<8xf32>
    %186 = vector.shape_cast %185 : vector<8xf32> to vector<8x1xf32>
    %cst_74 = arith.constant 1.562500e-02 : f32
    %187 = vector.broadcast %cst_74 : f32 to vector<8x1xf32>
    %188 = arith.mulf %186, %187 : vector<8x1xf32>
    %189 = arith.mulf %184, %184 : vector<8x128xf32>
    %cst_75 = arith.constant dense<0.000000e+00> : vector<8xf32>
    %190 = vector.multi_reduction <add>, %189, %cst_75 [1] : vector<8x128xf32> to vector<8xf32>
    %191 = vector.shape_cast %190 : vector<8xf32> to vector<8x1xf32>
    %cst_76 = arith.constant 1.562500e-02 : f32
    %192 = vector.broadcast %cst_76 : f32 to vector<8x1xf32>
    %193 = arith.mulf %191, %192 : vector<8x1xf32>
    %194 = arith.mulf %188, %188 : vector<8x1xf32>
    %195 = arith.subf %193, %194 : vector<8x1xf32>
    %196 = vector.broadcast %188 : vector<8x1xf32> to vector<8x128xf32>
    %197 = arith.subf %184, %196 : vector<8x128xf32>
    %cst_77 = arith.constant 9.99999974E-6 : f32
    %198 = vector.broadcast %cst_77 : f32 to vector<8x1xf32>
    %199 = arith.addf %195, %198 : vector<8x1xf32>
    %200 = math.rsqrt %199 : vector<8x1xf32>
    %201 = vector.broadcast %200 : vector<8x1xf32> to vector<8x128xf32>
    %202 = arith.mulf %197, %201 : vector<8x128xf32>
    %c18 = arith.constant 18 : index
    %c0_78 = arith.constant 0 : index
    %203 = vector.load %arg4[%c18, %c0_78] : memref<24x128xf32, #tpu.memory_space<vmem>>, vector<1x128xf32>
    %204 = vector.broadcast %203 : vector<1x128xf32> to vector<8x128xf32>
    %205 = arith.mulf %202, %204 : vector<8x128xf32>
    %c19 = arith.constant 19 : index
    %c0_79 = arith.constant 0 : index
    %206 = vector.load %arg4[%c19, %c0_79] : memref<24x128xf32, #tpu.memory_space<vmem>>, vector<1x128xf32>
    %207 = vector.broadcast %206 : vector<1x128xf32> to vector<8x128xf32>
    %208 = arith.addf %205, %207 : vector<8x128xf32>
    %c1280 = arith.constant 1280 : index
    %c0_80 = arith.constant 0 : index
    %209 = vector.load %arg3[%c1280, %c0_80] : memref<1408x256xbf16, #tpu.memory_space<vmem>>, vector<128x128xbf16>
    %210 = arith.truncf %208 : vector<8x128xf32> to vector<8x128xbf16>
    %cst_81 = arith.constant dense<0.000000e+00> : vector<8x128xf32>
    %211 = tpu.matmul %210, %209, %cst_81 {dimension_numbers = #tpu.dot_dimension_numbers<[1], [0], [0], [1], [0, 0, 1, 1], [], []>} : vector<8x128xbf16>, vector<128x128xbf16>, vector<8x128xf32> -> vector<8x128xf32>
    %c20 = arith.constant 20 : index
    %c0_82 = arith.constant 0 : index
    %212 = vector.load %arg4[%c20, %c0_82] : memref<24x128xf32, #tpu.memory_space<vmem>>, vector<1x128xf32>
    %213 = vector.broadcast %212 : vector<1x128xf32> to vector<8x128xf32>
    %214 = arith.addf %211, %213 : vector<8x128xf32>
    %215 = tpu.iota {dimensions = array<i32: 1>} : vector<8x128xi32>
    %c48_i32 = arith.constant 48 : i32
    %216 = vector.broadcast %c48_i32 : i32 to vector<8x128xi32>
    %217 = arith.cmpi slt, %215, %216 : vector<8x128xi32>
    %218 = math.tanh %214 : vector<8x128xf32>
    %219 = arith.select %217, %218, %214 : vector<8x128xi1>, vector<8x128xf32>
    %c0_83 = arith.constant 0 : index
    %c0_84 = arith.constant 0 : index
    %220 = vector.load %arg7[%c0_83, %c0_84] : memref<8x128xf32, #tpu.memory_space<vmem>>, vector<8x128xf32>
    tpu.vector_store %arg7[%c0_83, %c0_84], %150 {strides = array<i32>} : memref<8x128xf32, #tpu.memory_space<vmem>>, vector<8x128xf32>,
    %c0_85 = arith.constant 0 : index
    %c0_86 = arith.constant 0 : index
    %c0_87 = arith.constant 0 : index
    %221 = vector.load %arg5[%c0_85, %c0_86, %c0_87] : memref<1x8x128xf32, #tpu.memory_space<vmem>>, vector<1x8x128xf32>
    %222 = vector.shape_cast %221 : vector<1x8x128xf32> to vector<8x128xf32>
    %223 = vector.shape_cast %219 : vector<8x128xf32> to vector<1x8x128xf32>
    tpu.vector_store %arg5[%c0_85, %c0_86, %c0_87], %223 {strides = array<i32>} : memref<1x8x128xf32, #tpu.memory_space<vmem>>, vector<1x8x128xf32>,
    %c0_88 = arith.constant 0 : index
    %c0_89 = arith.constant 0 : index
    %c0_90 = arith.constant 0 : index
    %224 = vector.load %arg6[%c0_88, %c0_89, %c0_90] : memref<1x8x128xf32, #tpu.memory_space<vmem>>, vector<1x8x128xf32>
    %225 = vector.shape_cast %224 : vector<1x8x128xf32> to vector<8x128xf32>
    %226 = vector.shape_cast %150 : vector<8x128xf32> to vector<1x8x128xf32>
    tpu.vector_store %arg6[%c0_88, %c0_89, %c0_90], %226 {strides = array<i32>} : memref<1x8x128xf32, #tpu.memory_space<vmem>>, vector<1x8x128xf32>,
    return
  }
  func.func @transform_0(%arg0: i32) -> (i32, i32, i32) {
    %c0_i32 = arith.constant 0 : i32
    %c0_i32_0 = arith.constant 0 : i32
    %c0_i32_1 = arith.constant 0 : i32
    return %arg0, %c0_i32, %c0_i32_0 : i32, i32, i32
  }
  func.func @transform_1(%arg0: i32) -> (i32, i32, i32) {
    %c0_i32 = arith.constant 0 : i32
    %c0_i32_0 = arith.constant 0 : i32
    %c0_i32_1 = arith.constant 0 : i32
    %c0_i32_2 = arith.constant 0 : i32
    return %c0_i32, %c0_i32_0, %c0_i32_1 : i32, i32, i32
  }
  func.func @transform_2(%arg0: i32) -> (i32, i32) {
    %c0_i32 = arith.constant 0 : i32
    %c0_i32_0 = arith.constant 0 : i32
    %c0_i32_1 = arith.constant 0 : i32
    return %c0_i32, %c0_i32_0 : i32, i32
  }
  func.func @transform_3(%arg0: i32) -> (i32, i32) {
    %c0_i32 = arith.constant 0 : i32
    %c0_i32_0 = arith.constant 0 : i32
    %c0_i32_1 = arith.constant 0 : i32
    return %c0_i32, %c0_i32_0 : i32, i32
  }
  func.func @transform_4(%arg0: i32) -> (i32, i32, i32) {
    %c0_i32 = arith.constant 0 : i32
    %c0_i32_0 = arith.constant 0 : i32
    %c0_i32_1 = arith.constant 0 : i32
    return %arg0, %c0_i32, %c0_i32_0 : i32, i32, i32
  }
  func.func @transform_5(%arg0: i32) -> (i32, i32, i32) {
    %c0_i32 = arith.constant 0 : i32
    %c0_i32_0 = arith.constant 0 : i32
    %c0_i32_1 = arith.constant 0 : i32
    return %arg0, %c0_i32, %c0_i32_0 : i32, i32, i32
  }
}

</mosaic_0001>

<llo_original>
// kernel: tpu_custom_call.1
$region0: #{tpu_custom_call.1}
  #allocation0 [shape = 'u32[]', space=smem, size = 0x4, offset = 0x4, fixed_abs, tag = 'smem constant byte address 0x4 - core index']
  #allocation1 [shape = 'u32[144,128]{1,0:T(1,128)}', space=vmem, size = 0x12000, scoped, tag = 'internal scratch']
  #allocation2 [shape = 'f32[8,128]{1,0:T(8,128)}', space=vmem, size = 0x1000, scoped, tag = 'scratch operand']
  %s0 = inlined_call_operand.hbm [shape: f32[4,8,128], index: 0, kind: input, shape index: {}]
  %s1 = inlined_call_operand.hbm [shape: f32[2,8,128], index: 1, kind: input, shape index: {}]
  %s2 = inlined_call_operand.hbm [shape: bf16[1408,256], index: 2, kind: input, shape index: {}]
  %s3 = inlined_call_operand.hbm [shape: f32[24,128], index: 3, kind: input, shape index: {}]
  %s4 = inlined_call_operand.hbm [shape: f32[4,8,128], index: 4, kind: output, shape index: {0}]
  %s5 = inlined_call_operand.hbm [shape: f32[4,8,128], index: 5, kind: output, shape index: {1}]
  %6 = xla_tuple %s4, %s5
  %s7 = sld [smem:[#allocation0]]
  $region77: #{tpu_custom_call.1} parent=0
    _
  %s9 = ssub.s32 1, %s7
  %s10 = scalar_select 0, %s9, %s7
  $region1: #{tpu_custom_call.1} parent=0
    #allocation3 [shape = 'u8[8192]{0}', space=vmem, size = 0x2000, scoped, tag = 'input window, operand 0']
    #allocation4 [shape = 's32[2]{0}', space=sflag, size = 0x8, scoped, tag = 'scoped memory for tpu_custom_call.1']
    #allocation5 [shape = 's32[2]{0}', space=sflag, size = 0x8, scoped, tag = 'scoped memory for tpu_custom_call.1']
    #allocation6 [shape = 'u8[8192]{0}', space=vmem, size = 0x2000, scoped, tag = 'input window, operand 1, single buffered']
    #allocation7 [shape = 's32[1]{0}', space=sflag, size = 0x4, scoped, tag = 'scoped memory for tpu_custom_call.1']
    #allocation8 [shape = 'u8[720896]{0}', space=vmem, size = 0xb0000, scoped, tag = 'input window, operand 2, single buffered']
    #allocation9 [shape = 'u8[12288]{0}', space=vmem, size = 0x3000, scoped, tag = 'input window, operand 3, single buffered']
    #allocation10 [shape = 's32[1]{0}', space=sflag, size = 0x4, scoped, tag = 'scoped memory for tpu_custom_call.1']
    #allocation11 [shape = 'u8[8192]{0}', space=vmem, size = 0x2000, scoped, tag = 'output window, operand 0']
    #allocation12 [shape = 'u8[8192]{0}', space=vmem, size = 0x2000, scoped, tag = 'output window, operand 1']
    #allocation13 [shape = 's32[2]{0}', space=sflag, size = 0x8, scoped, tag = 'scoped memory for tpu_custom_call.1']
    %11 = vsyncpa [#allocation4], 0
    %s12 = scalar_lea.sflag [#allocation4], 1
    %13 = vsyncpa %s12, 0
    %14 = vsyncpa [#allocation7], 0
    %15 = vsyncpa [#allocation10], 0
    %16 = vsyncpa [#allocation5], 0
    %s17 = scalar_lea.sflag [#allocation5], 1
    %18 = vsyncpa %s17, 0
    %19 = vsyncpa [#allocation13], 0
    %s20 = scalar_lea.sflag [#allocation13], 1
    %21 = vsyncpa %s20, 0
    loop: start=0, step=1, limit=6
    $region2: #{tpu_custom_call.1} parent=1 // loop_pre_header
      _
    $region3: #{tpu_custom_call.1} parent=1 // loop_header
      %s23 = sphi 0, %s27
      %p24 = scmp.ge.s32.totalorder %s23, 6
      %s33 = sphi 0, %s35
      %s36 = sphi 0, %s33
      %s37 = sphi 0, %s36
      %s53 = sphi 0, %s37
      %s57 = sphi 0, %s57
      %s59 = sphi 0, %s57
      %s60 = sphi 0, %s59
      %s74 = sphi 0, %s60
      %s78 = sphi 0, %s78
      %s80 = sphi 0, %s78
      %s81 = sphi 0, %s80
      %s95 = sphi 0, %s81
      %s99 = sphi 0, %s99
      %s101 = sphi 0, %s99
      %s102 = sphi 0, %s101
      %s116 = sphi 0, %s102
      %s122 = sphi 0, %s124
      %s125 = sphi 0, %s122
      %s126 = sphi 0, %s125
      %s142 = sphi 0, %s126
      %s148 = sphi 0, %s150
      %s151 = sphi 0, %s148
      %s152 = sphi 0, %s151
      %s168 = sphi 0, %s152
    $region4: #{tpu_custom_call.1} parent=1 // loop_header_branch
      %26 = sbr.rel (%p24) target = $region8
    $region5: #{tpu_custom_call.1} parent=1 // loop_body
      %s28 = ssub.s32 %s23, 1
      %s29 = ssub.s32 %s23, 2
      %s30 = sadd.s32 %s23, 1
      %s31 = ssub.s32 %s23, %s30
      %p32 = scmp.eq.s32.totalorder %s31, 0
      %s34 = sadd.s32 %s33, 1
      %s35 = scalar_select %p32, %s33, %s34
      %p38 = pneg %p32
      %p39 = scmp.eq.s32.totalorder %s23, 3
      %p40 = por %p38, %p39
      %p41 = scmp.ne.s32.totalorder %s33, %s36
      %p42 = scmp.eq.s32.totalorder %s23, 0
      %p43 = por %p41, %p42
      %p44 = scmp.ne.s32.totalorder %s33, %s36
      %p45 = scmp.eq.s32.totalorder %s28, 3
      %p46 = por %p44, %p45
      %p47 = scmp.ne.s32.totalorder %s36, %s37
      %p48 = scmp.eq.s32.totalorder %s28, 0
      %p49 = por %p47, %p48
      %p50 = scmp.ne.s32.totalorder %s36, %s37
      %p51 = scmp.eq.s32.totalorder %s29, 3
      %p52 = por %p50, %p51
      %p54 = scmp.ne.s32.totalorder %s37, %s53
      %p55 = scmp.eq.s32.totalorder %s29, 0
      %p56 = por %p54, %p55
      %s58 = sadd.s32 %s57, 1
      %p61 = scmp.eq.s32.totalorder %s23, 3
      %p62 = scmp.ne.s32.totalorder %s57, %s59
      %p63 = scmp.eq.s32.totalorder %s23, 0
      %p64 = por %p62, %p63
      %p65 = scmp.ne.s32.totalorder %s57, %s59
      %p66 = scmp.eq.s32.totalorder %s28, 3
      %p67 = por %p65, %p66
      %p68 = scmp.ne.s32.totalorder %s59, %s60
      %p69 = scmp.eq.s32.totalorder %s28, 0
      %p70 = por %p68, %p69
      %p71 = scmp.ne.s32.totalorder %s59, %s60
      %p72 = scmp.eq.s32.totalorder %s29, 3
      %p73 = por %p71, %p72
      %p75 = scmp.ne.s32.totalorder %s60, %s74
      %p76 = scmp.eq.s32.totalorder %s29, 0
      %p77 = por %p75, %p76
      %s79 = sadd.s32 %s78, 1
      %p82 = scmp.eq.s32.totalorder %s23, 3
      %p83 = scmp.ne.s32.totalorder %s78, %s80
      %p84 = scmp.eq.s32.totalorder %s23, 0
      %p85 = por %p83, %p84
      %p86 = scmp.ne.s32.totalorder %s78, %s80
      %p87 = scmp.eq.s32.totalorder %s28, 3
      %p88 = por %p86, %p87
      %p89 = scmp.ne.s32.totalorder %s80, %s81
      %p90 = scmp.eq.s32.totalorder %s28, 0
      %p91 = por %p89, %p90
      %p92 = scmp.ne.s32.totalorder %s80, %s81
      %p93 = scmp.eq.s32.totalorder %s29, 3
      %p94 = por %p92, %p93
      %p96 = scmp.ne.s32.totalorder %s81, %s95
      %p97 = scmp.eq.s32.totalorder %s29, 0
      %p98 = por %p96, %p97
      %s100 = sadd.s32 %s99, 1
      %p103 = scmp.eq.s32.totalorder %s23, 3
      %p104 = scmp.ne.s32.totalorder %s99, %s101
      %p105 = scmp.eq.s32.totalorder %s23, 0
      %p106 = por %p104, %p105
      %p107 = scmp.ne.s32.totalorder %s99, %s101
      %p108 = scmp.eq.s32.totalorder %s28, 3
      %p109 = por %p107, %p108
      %p110 = scmp.ne.s32.totalorder %s101, %s102
      %p111 = scmp.eq.s32.totalorder %s28, 0
      %p112 = por %p110, %p111
      %p113 = scmp.ne.s32.totalorder %s101, %s102
      %p114 = scmp.eq.s32.totalorder %s29, 3
      %p115 = por %p113, %p114
      %p117 = scmp.ne.s32.totalorder %s102, %s116
      %p118 = scmp.eq.s32.totalorder %s29, 0
      %p119 = por %p117, %p118
      %s120 = ssub.s32 %s23, %s30
      %p121 = scmp.eq.s32.totalorder %s120, 0
      %s123 = sadd.s32 %s122, 1
      %s124 = scalar_select %p121, %s122, %s123
      %p127 = pneg %p121
      %p128 = scmp.eq.s32.totalorder %s23, 3
      %p129 = por %p127, %p128
      %p130 = scmp.ne.s32.totalorder %s122, %s125
      %p131 = scmp.eq.s32.totalorder %s23, 0
      %p132 = por %p130, %p131
      %p133 = scmp.ne.s32.totalorder %s122, %s125
      %p134 = scmp.eq.s32.totalorder %s28, 3
      %p135 = por %p133, %p134
      %p136 = scmp.ne.s32.totalorder %s125, %s126
      %p137 = scmp.eq.s32.totalorder %s28, 0
      %p138 = por %p136, %p137
      %p139 = scmp.ne.s32.totalorder %s125, %s126
      %p140 = scmp.eq.s32.totalorder %s29, 3
      %p141 = por %p139, %p140
      %p143 = scmp.ne.s32.totalorder %s126, %s142
      %p144 = scmp.eq.s32.totalorder %s29, 0
      %p145 = por %p143, %p144
      %s146 = ssub.s32 %s23, %s30
      %p147 = scmp.eq.s32.totalorder %s146, 0
      %s149 = sadd.s32 %s148, 1
      %s150 = scalar_select %p147, %s148, %s149
      %p153 = pneg %p147
      %p154 = scmp.eq.s32.totalorder %s23, 3
      %p155 = por %p153, %p154
      %p156 = scmp.ne.s32.totalorder %s148, %s151
      %p157 = scmp.eq.s32.totalorder %s23, 0
      %p158 = por %p156, %p157
      %p159 = scmp.ne.s32.totalorder %s148, %s151
      %p160 = scmp.eq.s32.totalorder %s28, 3
      %p161 = por %p159, %p160
      %p162 = scmp.ne.s32.totalorder %s151, %s152
      %p163 = scmp.eq.s32.totalorder %s28, 0
      %p164 = por %p162, %p163
      %p165 = scmp.ne.s32.totalorder %s151, %s152
      %p166 = scmp.eq.s32.totalorder %s29, 3
      %p167 = por %p165, %p166
      %p169 = scmp.ne.s32.totalorder %s152, %s168
      %p170 = scmp.eq.s32.totalorder %s29, 0
      %p171 = por %p169, %p170
      %p172 = scmp.le.s32.totalorder 1, %s23
      %p173 = scmp.lt.s32.totalorder %s23, 5
      %p174 = pnand %p172, %p173
      %p175 = pneg %p174
      // Predicated region
      $region9: #{tpu_custom_call.1} parent=5 // pred_check
        _
      $region10: #{tpu_custom_call.1} parent=5 // pred_check_branch
        %177 = sbr.rel (%p174) target = $region12
      $region11: #{tpu_custom_call.1} parent=5 // pred_region
        %s178 = ssub.s32 %s23, 1
        // Predicated region
        $region13: #{tpu_custom_call.1} parent=11 // pred_check
          %p179 = pneg %p70
        $region14: #{tpu_custom_call.1} parent=11 // pred_check_branch
          %181 = sbr.rel (%p179) target = $region16
        $region15: #{tpu_custom_call.1} parent=11 // pred_region
          %s183 = ssub.s32 256, 256
          %184 = vsyncadd [#allocation7], %s183
          %s185 = sshll.u32 [#allocation6], 4
          %s186 = int_to_ptr.vmem [resolvable:$true] %s185
          %191 = dma.hbm_to_vmem [thread:$0]  %s1, 256, %s186, [#allocation7], 128, 128, 8
        $region16: #{tpu_custom_call.1} parent=11 // pred_fallthru
          _
        // Predicated region
        $region17: #{tpu_custom_call.1} parent=11 // pred_check
          %p192 = pneg %p91
        $region18: #{tpu_custom_call.1} parent=11 // pred_check_branch
          %194 = sbr.rel (%p192) target = $region20
        $region19: #{tpu_custom_call.1} parent=11 // pred_region
          %s196 = ssub.s32 22528, 22528
          %197 = vsyncadd [#allocation7], %s196
          %s198 = sshll.u32 [#allocation8], 4
          %s199 = int_to_ptr.vmem [resolvable:$true] %s198
          %204 = dma.hbm_to_vmem [thread:$0]  %s2, 22528, %s199, [#allocation7], 128, 128, 8
        $region20: #{tpu_custom_call.1} parent=11 // pred_fallthru
          _
        // Predicated region
        $region21: #{tpu_custom_call.1} parent=11 // pred_check
          %p205 = pneg %p112
        $region22: #{tpu_custom_call.1} parent=11 // pred_check_branch
          %207 = sbr.rel (%p205) target = $region24
        $region23: #{tpu_custom_call.1} parent=11 // pred_region
          %s209 = ssub.s32 384, 384
          %210 = vsyncadd [#allocation10], %s209
          %s211 = sshll.u32 [#allocation9], 4
          %s212 = int_to_ptr.vmem [resolvable:$true] %s211
          %217 = dma.hbm_to_vmem [thread:$0]  %s3, 384, %s212, [#allocation10], 128, 128, 8
        $region24: #{tpu_custom_call.1} parent=11 // pred_fallthru
          _
      $region12: #{tpu_custom_call.1} parent=5 // pred_fallthru
        _
      %p218 = scmp.lt.s32.totalorder %s23, 4
      // Predicated region
      $region25: #{tpu_custom_call.1} parent=5 // pred_check
        %p219 = pneg %p218
      $region26: #{tpu_custom_call.1} parent=5 // pred_check_branch
        %221 = sbr.rel (%p219) target = $region28
      $region27: #{tpu_custom_call.1} parent=5 // pred_region
        // Predicated region
        $region29: #{tpu_custom_call.1} parent=27 // pred_check
          %p222 = pneg %p43
        $region30: #{tpu_custom_call.1} parent=27 // pred_check_branch
          %224 = sbr.rel (%p222) target = $region32
        $region31: #{tpu_custom_call.1} parent=27 // pred_region
          %s225 = sand.u32 %s33, 1
          %s226 = scalar_lea.sflag [#allocation4], %s225
          %s227 = sand.u32 %s33, 1
          %s228 = smul.addr %s227, 8
          %s229 = scalar_lea.vmem [#allocation3], %s228
          %s231 = ssub.s32 128, 128
          %232 = vsyncadd %s226, %s231
          %s233 = smul.addr %s23, 128
          %s234 = scalar_lea.hbm %s0, %s233
          %s236 = sshll.u32 %s229, 4
          %s237 = int_to_ptr.vmem [resolvable:$true] %s236
          %239 = dma.hbm_to_vmem [thread:$0]  %s234, 128, %s237, %s226
        $region32: #{tpu_custom_call.1} parent=27 // pred_fallthru
          _
      $region28: #{tpu_custom_call.1} parent=5 // pred_fallthru
        _
      %p240 = scmp.le.s32.totalorder 1, %s23
      %p241 = scmp.lt.s32.totalorder %s23, 5
      %p242 = pnand %p240, %p241
      %p243 = pneg %p242
      // Predicated region
      $region33: #{tpu_custom_call.1} parent=5 // pred_check
        _
      $region34: #{tpu_custom_call.1} parent=5 // pred_check_branch
        %245 = sbr.rel (%p242) target = $region36
      $region35: #{tpu_custom_call.1} parent=5 // pred_region
        %s246 = ssub.s32 %s23, 1
        %s247 = sand.u32 %s36, 1
        %s248 = scalar_lea.sflag [#allocation4], %s247
        %s249 = sand.u32 %s36, 1
        %s250 = smul.addr %s249, 8
        %s251 = scalar_lea.vmem [#allocation3], %s250
        // Predicated region
        $region37: #{tpu_custom_call.1} parent=35 // pred_check
          %p252 = pneg %p49
        $region38: #{tpu_custom_call.1} parent=35 // pred_check_branch
          %254 = sbr.rel (%p252) target = $region40
        $region39: #{tpu_custom_call.1} parent=35 // pred_region
          %255 = dma.done %s248, 128
        $region40: #{tpu_custom_call.1} parent=35 // pred_fallthru
          _
        // Predicated region
        $region41: #{tpu_custom_call.1} parent=35 // pred_check
          %p256 = pneg %p70
        $region42: #{tpu_custom_call.1} parent=35 // pred_check_branch
          %258 = sbr.rel (%p256) target = $region44
        $region43: #{tpu_custom_call.1} parent=35 // pred_region
          %259 = dma.done [#allocation7], 256
        $region44: #{tpu_custom_call.1} parent=35 // pred_fallthru
          _
        // Predicated region
        $region45: #{tpu_custom_call.1} parent=35 // pred_check
          %p260 = pneg %p91
        $region46: #{tpu_custom_call.1} parent=35 // pred_check_branch
          %262 = sbr.rel (%p260) target = $region48
        $region47: #{tpu_custom_call.1} parent=35 // pred_region
          %263 = dma.done [#allocation7], 22528
        $region48: #{tpu_custom_call.1} parent=35 // pred_fallthru
          _
        // Predicated region
        $region49: #{tpu_custom_call.1} parent=35 // pred_check
          %p264 = pneg %p112
        $region50: #{tpu_custom_call.1} parent=35 // pred_check_branch
          %266 = sbr.rel (%p264) target = $region52
        $region51: #{tpu_custom_call.1} parent=35 // pred_region
          %267 = dma.done [#allocation10], 384
        $region52: #{tpu_custom_call.1} parent=35 // pred_fallthru
          _
        %s268 = sand.u32 %s36, 1
        %s269 = scalar_lea.sflag [#allocation4], %s268
        %s270 = sand.u32 %s36, 1
        %s271 = smul.addr %s270, 8
        %s272 = scalar_lea.vmem [#allocation3], %s271
        %p273 = pneg %p49
        %p274 = pneg %p46
        %p275 = pneg %p70
        %p276 = pneg %p67
        %p277 = pneg %p91
        %p278 = pneg %p88
        %p279 = pneg %p112
        %p280 = pneg %p109
        %p281 = pneg %p138
        %p282 = pneg %p135
        %s283 = sand.u32 %s125, 1
        %s284 = scalar_lea.sflag [#allocation5], %s283
        %s285 = sand.u32 %s125, 1
        %s286 = smul.addr %s285, 8
        %s287 = scalar_lea.vmem [#allocation11], %s286
        %p288 = pneg %p164
        %p289 = pneg %p161
        %s290 = sand.u32 %s151, 1
        %s291 = scalar_lea.sflag [#allocation13], %s290
        %s292 = sand.u32 %s151, 1
        %s293 = smul.addr %s292, 8
        %s294 = scalar_lea.vmem [#allocation12], %s293
        %p296 = scmp.eq.s32.totalorder %s28, 0
        // Predicated region
        $region53: #{tpu_custom_call.1} parent=35 // pred_check
          %p297 = pneg %p296
        $region54: #{tpu_custom_call.1} parent=35 // pred_check_branch
          %299 = sbr.rel (%p297) target = $region56
        $region55: #{tpu_custom_call.1} parent=35 // pred_region
          %s300 = scalar_lea.vmem [#allocation6], 8
          %v301 = vld [vmem:[%s300] sm:$0xff]
          %302 = vst [vmem:[#allocation2] sm:$0xff] %v301
        $region56: #{tpu_custom_call.1} parent=35 // pred_fallthru
          _
        %v303 = vld [vmem:[%s251] sm:$0xff]
        %v304 = vld [vmem:[#allocation6] sm:$0xff]
        %v305 = vld [vmem:[#allocation2] sm:$0xff]
        %v306 = vld [vmem:[#allocation8] sm:$0xf]
        %v307 = vld [vmem:[#allocation8 + $0x8] sm:$0xf]
        %v308 = vld [vmem:[#allocation8 + $0x10] sm:$0xf]
        %v309 = vld [vmem:[#allocation8 + $0x18] sm:$0xf]
        %v310 = vld [vmem:[#allocation8 + $0x20] sm:$0xf]
        %v311 = vld [vmem:[#allocation8 + $0x28] sm:$0xf]
        %v312 = vld [vmem:[#allocation8 + $0x30] sm:$0xf]
        %v313 = vld [vmem:[#allocation8 + $0x38] sm:$0xf]
        %v314 = vld [vmem:[#allocation8 + $0x40] sm:$0xf]
        %v315 = vld [vmem:[#allocation8 + $0x48] sm:$0xf]
        %v316 = vld [vmem:[#allocation8 + $0x50] sm:$0xf]
        %v317 = vld [vmem:[#allocation8 + $0x58] sm:$0xf]
        %v318 = vld [vmem:[#allocation8 + $0x60] sm:$0xf]
        %v319 = vld [vmem:[#allocation8 + $0x68] sm:$0xf]
        %v320 = vld [vmem:[#allocation8 + $0x70] sm:$0xf]
        %v321 = vld [vmem:[#allocation8 + $0x78] sm:$0xf]
        %v322 = vpack.c.bf16 %v303, %v303
        %v323 = vld [vmem:[#allocation9] sm:$0x1]
        %v324 = vlaneseq
        %v325 = vshrl.u32 %v324, 7
        %v326 = vsub.s32 0, %v325
        %v327 = vrot.slane %v323, %v326
        %v344 = vunpack.c.l.b16 %v306
        %v345 = vunpack.c.l.b16 %v307
        %v346 = vunpack.c.l.b16 %v308
        %v347 = vunpack.c.l.b16 %v309
        %v348 = vunpack.c.l.b16 %v310
        %v349 = vunpack.c.l.b16 %v311
        %v350 = vunpack.c.l.b16 %v312
        %v351 = vunpack.c.l.b16 %v313
        %v352 = vunpack.c.l.b16 %v314
        %v353 = vunpack.c.l.b16 %v315
        %v354 = vunpack.c.l.b16 %v316
        %v355 = vunpack.c.l.b16 %v317
        %v356 = vunpack.c.l.b16 %v318
        %v357 = vunpack.c.l.b16 %v319
        %v358 = vunpack.c.l.b16 %v320
        %v359 = vunpack.c.l.b16 %v321
        %v360 = vpack.c.b16 %v345, %v344
        %v361 = vpack.c.b16 %v347, %v346
        %v362 = vpack.c.b16 %v349, %v348
        %v363 = vpack.c.b16 %v351, %v350
        %v364 = vpack.c.b16 %v353, %v352
        %v365 = vpack.c.b16 %v355, %v354
        %v366 = vpack.c.b16 %v357, %v356
        %v367 = vpack.c.b16 %v359, %v358
        %376 = vmatprep.subr.bf16.mxu0 0
        %377 = vmatpush1.bf16.msra.mxu0 %v360
        %378 = vmatprep.subr.bf16.mxu0 0
        %379 = vmatpush1.bf16.msra.mxu0 %v361
        %380 = vmatprep.subr.bf16.mxu0 0
        %381 = vmatpush1.bf16.msra.mxu0 %v362
        %382 = vmatprep.subr.bf16.mxu0 0
        %383 = vmatpush1.bf16.msra.mxu0 %v363
        %384 = vmatprep.subr.bf16.mxu0 0
        %385 = vmatpush1.bf16.msra.mxu0 %v364
        %386 = vmatprep.subr.bf16.mxu0 0
        %387 = vmatpush1.bf16.msra.mxu0 %v365
        %388 = vmatprep.subr.bf16.mxu0 0
        %389 = vmatpush1.bf16.msra.mxu0 %v366
        %390 = vmatprep.subr.bf16.mxu0 0
        %391 = vmatpush1.bf16.msra.mxu0 %v367
        %392 = vmatprep.subr.bf16.mxu0 0
        %393 = vmatpush1.bf16.msra.mxu0 0
        %394 = vmatprep.subr.bf16.mxu0 0
        %395 = vmatpush1.bf16.msra.mxu0 0
        %396 = vmatprep.subr.bf16.mxu0 0
        %397 = vmatpush1.bf16.msra.mxu0 0
        %398 = vmatprep.subr.bf16.mxu0 0
        %399 = vmatpush1.bf16.msra.mxu0 0
        %400 = vmatprep.subr.bf16.mxu0 0
        %401 = vmatpush1.bf16.msra.mxu0 0
        %402 = vmatprep.subr.bf16.mxu0 0
        %403 = vmatpush1.bf16.msra.mxu0 0
        %404 = vmatprep.subr.bf16.mxu0 0
        %405 = vmatpush1.bf16.msra.mxu0 0
        %406 = vmatprep.subr.bf16.mxu0 0
        %407 = vmatpush1.bf16.msra.mxu0 0
        %408 = vmatprep.mubr.bf16.mxu0 0
        %409 = vmatmul.mubr.bf16.gmra.mrb[0].mxu0 %v322
        %v410 = vpop.f32.mrb[0].mxu0
        %v411 = vadd.f32 %v327, %v410
        %v412 = vpop.f32.mrb[0].mxu0
        %v413 = vpop.f32.mrb[0].mxu0
        %v414 = vpop.f32.mrb[0].mxu0
        %415 = vdwg.mxu0
        %416 = vadd.xlane.f32.xlu0 %v411
        %v417 = vpop.xlane.xlu0 %416
        %v418 = vmul.f32 %v417, 0.03125
        %v419 = vmul.f32 %v411, %v411
        %420 = vadd.xlane.f32.xlu0 %v419
        %v421 = vpop.xlane.xlu0 %420
        %v422 = vmul.f32 %v421, 0.03125
        %v423 = vmul.f32 %v418, %v418
        %v424 = vsub.f32 %v422, %v423
        %v425 = vsub.f32 %v411, %v418
        %v426 = vadd.f32 %v424, 1e-05
        %v427 = vrsqrt.pop %v426
        %v428 = vmul.f32 %v425, %v427
        %v429 = vld [vmem:[#allocation9 + $0x1] sm:$0x1]
        %v430 = vlaneseq
        %v431 = vshrl.u32 %v430, 7
        %v432 = vsub.s32 0, %v431
        %v433 = vrot.slane %v429, %v432
        %v434 = vmul.f32 %v428, %v433
        %v435 = vld [vmem:[#allocation9 + $0x2] sm:$0x1]
        %v436 = vlaneseq
        %v437 = vshrl.u32 %v436, 7
        %v438 = vsub.s32 0, %v437
        %v439 = vrot.slane %v435, %v438
        %v440 = vadd.f32 %v434, %v439
        %v441 = vld [vmem:[#allocation8 + $0x80] sm:$0xff]
        %v442 = vld [vmem:[#allocation8 + $0x88] sm:$0xff]
        %v443 = vld [vmem:[#allocation8 + $0x90] sm:$0xff]
        %v444 = vld [vmem:[#allocation8 + $0x98] sm:$0xff]
        %v445 = vld [vmem:[#allocation8 + $0xa0] sm:$0xff]
        %v446 = vld [vmem:[#allocation8 + $0xa8] sm:$0xff]
        %v447 = vld [vmem:[#allocation8 + $0xb0] sm:$0xff]
        %v448 = vld [vmem:[#allocation8 + $0xb8] sm:$0xff]
        %v449 = vld [vmem:[#allocation8 + $0xc0] sm:$0xff]
        %v450 = vld [vmem:[#allocation8 + $0xc8] sm:$0xff]
        %v451 = vld [vmem:[#allocation8 + $0xd0] sm:$0xff]
        %v452 = vld [vmem:[#allocation8 + $0xd8] sm:$0xff]
        %v453 = vld [vmem:[#allocation8 + $0xe0] sm:$0xff]
        %v454 = vld [vmem:[#allocation8 + $0xe8] sm:$0xff]
        %v455 = vld [vmem:[#allocation8 + $0xf0] sm:$0xff]
        %v456 = vld [vmem:[#allocation8 + $0xf8] sm:$0xff]
        %v457 = vpack.c.bf16 %v440, %v440
        %v458 = vld [vmem:[#allocation8 + $0x100] sm:$0xff]
        %v459 = vld [vmem:[#allocation8 + $0x108] sm:$0xff]
        %v460 = vld [vmem:[#allocation8 + $0x110] sm:$0xff]
        %v461 = vld [vmem:[#allocation8 + $0x118] sm:$0xff]
        %v462 = vld [vmem:[#allocation8 + $0x120] sm:$0xff]
        %v463 = vld [vmem:[#allocation8 + $0x128] sm:$0xff]
        %v464 = vld [vmem:[#allocation8 + $0x130] sm:$0xff]
        %v465 = vld [vmem:[#allocation8 + $0x138] sm:$0xff]
        %v466 = vld [vmem:[#allocation8 + $0x140] sm:$0xff]
        %v467 = vld [vmem:[#allocation8 + $0x148] sm:$0xff]
        %v468 = vld [vmem:[#allocation8 + $0x150] sm:$0xff]
        %v469 = vld [vmem:[#allocation8 + $0x158] sm:$0xff]
        %v470 = vld [vmem:[#allocation8 + $0x160] sm:$0xff]
        %v471 = vld [vmem:[#allocation8 + $0x168] sm:$0xff]
        %v472 = vld [vmem:[#allocation8 + $0x170] sm:$0xff]
        %v473 = vld [vmem:[#allocation8 + $0x178] sm:$0xff]
        %v474 = vpack.c.bf16 %v305, %v305
        %v491 = vunpack.c.l.b16 %v458
        %v492 = vunpack.c.h.b16 %v458
        %v493 = vunpack.c.l.b16 %v459
        %v494 = vunpack.c.h.b16 %v459
        %v495 = vunpack.c.l.b16 %v460
        %v496 = vunpack.c.h.b16 %v460
        %v497 = vunpack.c.l.b16 %v461
        %v498 = vunpack.c.h.b16 %v461
        %v499 = vunpack.c.l.b16 %v462
        %v500 = vunpack.c.h.b16 %v462
        %v501 = vunpack.c.l.b16 %v463
        %v502 = vunpack.c.h.b16 %v463
        %v503 = vunpack.c.l.b16 %v464
        %v504 = vunpack.c.h.b16 %v464
        %v505 = vunpack.c.l.b16 %v465
        %v506 = vunpack.c.h.b16 %v465
        %v507 = vunpack.c.l.b16 %v466
        %v508 = vunpack.c.h.b16 %v466
        %v509 = vunpack.c.l.b16 %v467
        %v510 = vunpack.c.h.b16 %v467
        %v511 = vunpack.c.l.b16 %v468
        %v512 = vunpack.c.h.b16 %v468
        %v513 = vunpack.c.l.b16 %v469
        %v514 = vunpack.c.h.b16 %v469
        %v515 = vunpack.c.l.b16 %v470
        %v516 = vunpack.c.h.b16 %v470
        %v517 = vunpack.c.l.b16 %v471
        %v518 = vunpack.c.h.b16 %v471
        %v519 = vunpack.c.l.b16 %v472
        %v520 = vunpack.c.h.b16 %v472
        %v521 = vunpack.c.l.b16 %v473
        %v522 = vunpack.c.h.b16 %v473
        %v523 = vpack.c.b16 %v493, %v491
        %v524 = vpack.c.b16 %v494, %v492
        %v525 = vpack.c.b16 %v497, %v495
        %v526 = vpack.c.b16 %v498, %v496
        %v527 = vpack.c.b16 %v501, %v499
        %v528 = vpack.c.b16 %v502, %v500
        %v529 = vpack.c.b16 %v505, %v503
        %v530 = vpack.c.b16 %v506, %v504
        %v531 = vpack.c.b16 %v509, %v507
        %v532 = vpack.c.b16 %v510, %v508
        %v533 = vpack.c.b16 %v513, %v511
        %v534 = vpack.c.b16 %v514, %v512
        %v535 = vpack.c.b16 %v517, %v515
        %v536 = vpack.c.b16 %v518, %v516
        %v537 = vpack.c.b16 %v521, %v519
        %v538 = vpack.c.b16 %v522, %v520
        %555 = vmatprep.subr.bf16.mxu0 %v524
        %556 = vmatpush1.bf16.msra.mxu0 %v523
        %557 = vmatprep.subr.bf16.mxu0 %v526
        %558 = vmatpush1.bf16.msra.mxu0 %v525
        %559 = vmatprep.subr.bf16.mxu0 %v528
        %560 = vmatpush1.bf16.msra.mxu0 %v527
        %561 = vmatprep.subr.bf16.mxu0 %v530
        %562 = vmatpush1.bf16.msra.mxu0 %v529
        %563 = vmatprep.subr.bf16.mxu0 %v532
        %564 = vmatpush1.bf16.msra.mxu0 %v531
        %565 = vmatprep.subr.bf16.mxu0 %v534
        %566 = vmatpush1.bf16.msra.mxu0 %v533
        %567 = vmatprep.subr.bf16.mxu0 %v536
        %568 = vmatpush1.bf16.msra.mxu0 %v535
        %569 = vmatprep.subr.bf16.mxu0 %v538
        %570 = vmatpush1.bf16.msra.mxu0 %v537
        %571 = vmatprep.subr.bf16.mxu0 0
        %572 = vmatpush1.bf16.msra.mxu0 0
        %573 = vmatprep.subr.bf16.mxu0 0
        %574 = vmatpush1.bf16.msra.mxu0 0
        %575 = vmatprep.subr.bf16.mxu0 0
        %576 = vmatpush1.bf16.msra.mxu0 0
        %577 = vmatprep.subr.bf16.mxu0 0
        %578 = vmatpush1.bf16.msra.mxu0 0
        %579 = vmatprep.subr.bf16.mxu0 0
        %580 = vmatpush1.bf16.msra.mxu0 0
        %581 = vmatprep.subr.bf16.mxu0 0
        %582 = vmatpush1.bf16.msra.mxu0 0
        %583 = vmatprep.subr.bf16.mxu0 0
        %584 = vmatpush1.bf16.msra.mxu0 0
        %585 = vmatprep.subr.bf16.mxu0 0
        %586 = vmatpush1.bf16.msra.mxu0 0
        %587 = vmatprep.mubr.bf16.mxu0 0
        %588 = vmatmul.mubr.bf16.gmra.mrb[0].mxu0 %v474
        %v589 = vpop.f32.mrb[0].mxu0
        %v590 = vadd.f32 0.0, %v589
        %v591 = vpop.f32.mrb[0].mxu0
        %v592 = vadd.f32 0.0, %v591
        %v593 = vpop.f32.mrb[0].mxu0
        %v594 = vpop.f32.mrb[0].mxu0
        %595 = vdwg.mxu0
        %v612 = vunpack.c.l.b16 %v441
        %v613 = vunpack.c.h.b16 %v441
        %v614 = vunpack.c.l.b16 %v442
        %v615 = vunpack.c.h.b16 %v442
        %v616 = vunpack.c.l.b16 %v443
        %v617 = vunpack.c.h.b16 %v443
        %v618 = vunpack.c.l.b16 %v444
        %v619 = vunpack.c.h.b16 %v444
        %v620 = vunpack.c.l.b16 %v445
        %v621 = vunpack.c.h.b16 %v445
        %v622 = vunpack.c.l.b16 %v446
        %v623 = vunpack.c.h.b16 %v446
        %v624 = vunpack.c.l.b16 %v447
        %v625 = vunpack.c.h.b16 %v447
        %v626 = vunpack.c.l.b16 %v448
        %v627 = vunpack.c.h.b16 %v448
        %v628 = vunpack.c.l.b16 %v449
        %v629 = vunpack.c.h.b16 %v449
        %v630 = vunpack.c.l.b16 %v450
        %v631 = vunpack.c.h.b16 %v450
        %v632 = vunpack.c.l.b16 %v451
        %v633 = vunpack.c.h.b16 %v451
        %v634 = vunpack.c.l.b16 %v452
        %v635 = vunpack.c.h.b16 %v452
        %v636 = vunpack.c.l.b16 %v453
        %v637 = vunpack.c.h.b16 %v453
        %v638 = vunpack.c.l.b16 %v454
        %v639 = vunpack.c.h.b16 %v454
        %v640 = vunpack.c.l.b16 %v455
        %v641 = vunpack.c.h.b16 %v455
        %v642 = vunpack.c.l.b16 %v456
        %v643 = vunpack.c.h.b16 %v456
        %v644 = vpack.c.b16 %v614, %v612
        %v645 = vpack.c.b16 %v615, %v613
        %v646 = vpack.c.b16 %v618, %v616
        %v647 = vpack.c.b16 %v619, %v617
        %v648 = vpack.c.b16 %v622, %v620
        %v649 = vpack.c.b16 %v623, %v621
        %v650 = vpack.c.b16 %v626, %v624
        %v651 = vpack.c.b16 %v627, %v625
        %v652 = vpack.c.b16 %v630, %v628
        %v653 = vpack.c.b16 %v631, %v629
        %v654 = vpack.c.b16 %v634, %v632
        %v655 = vpack.c.b16 %v635, %v633
        %v656 = vpack.c.b16 %v638, %v636
        %v657 = vpack.c.b16 %v639, %v637
        %v658 = vpack.c.b16 %v642, %v640
        %v659 = vpack.c.b16 %v643, %v641
        %676 = vmatprep.subr.bf16.mxu0 %v645
        %677 = vmatpush1.bf16.msra.mxu0 %v644
        %678 = vmatprep.subr.bf16.mxu0 %v647
        %679 = vmatpush1.bf16.msra.mxu0 %v646
        %680 = vmatprep.subr.bf16.mxu0 %v649
        %681 = vmatpush1.bf16.msra.mxu0 %v648
        %682 = vmatprep.subr.bf16.mxu0 %v651
        %683 = vmatpush1.bf16.msra.mxu0 %v650
        %684 = vmatprep.subr.bf16.mxu0 %v653
        %685 = vmatpush1.bf16.msra.mxu0 %v652
        %686 = vmatprep.subr.bf16.mxu0 %v655
        %687 = vmatpush1.bf16.msra.mxu0 %v654
        %688 = vmatprep.subr.bf16.mxu0 %v657
        %689 = vmatpush1.bf16.msra.mxu0 %v656
        %690 = vmatprep.subr.bf16.mxu0 %v659
        %691 = vmatpush1.bf16.msra.mxu0 %v658
        %692 = vmatprep.subr.bf16.mxu0 0
        %693 = vmatpush1.bf16.msra.mxu0 0
        %694 = vmatprep.subr.bf16.mxu0 0
        %695 = vmatpush1.bf16.msra.mxu0 0
        %696 = vmatprep.subr.bf16.mxu0 0
        %697 = vmatpush1.bf16.msra.mxu0 0
        %698 = vmatprep.subr.bf16.mxu0 0
        %699 = vmatpush1.bf16.msra.mxu0 0
        %700 = vmatprep.subr.bf16.mxu0 0
        %701 = vmatpush1.bf16.msra.mxu0 0
        %702 = vmatprep.subr.bf16.mxu0 0
        %703 = vmatpush1.bf16.msra.mxu0 0
        %704 = vmatprep.subr.bf16.mxu0 0
        %705 = vmatpush1.bf16.msra.mxu0 0
        %706 = vmatprep.subr.bf16.mxu0 0
        %707 = vmatpush1.bf16.msra.mxu0 0
        %708 = vmatprep.mubr.bf16.mxu0 0
        %709 = vmatmul.mubr.bf16.gmra.mrb[0].mxu0 %v457
        %v710 = vpop.f32.mrb[0].mxu0
        %v711 = vadd.f32 %v590, %v710
        %v712 = vpop.f32.mrb[0].mxu0
        %v713 = vadd.f32 %v592, %v712
        %v714 = vpop.f32.mrb[0].mxu0
        %v715 = vpop.f32.mrb[0].mxu0
        %716 = vdwg.mxu0
        %v717 = vld [vmem:[#allocation9 + $0x3] sm:$0x1]
        %v718 = vlaneseq
        %v719 = vshrl.u32 %v718, 7
        %v720 = vsub.s32 0, %v719
        %v721 = vrot.slane %v717, %v720
        %v722 = vadd.f32 %v711, %v721
        %v723 = vmax.f32 %v722, 0.0
        %v724 = vld [vmem:[#allocation9 + $0x4] sm:$0x1]
        %v725 = vlaneseq
        %v726 = vshrl.u32 %v725, 7
        %v727 = vsub.s32 0, %v726
        %v728 = vrot.slane %v724, %v727
        %v729 = vadd.f32 %v713, %v728
        %v730 = vmax.f32 %v729, 0.0
        %v731 = vld [vmem:[#allocation8 + $0x180] sm:$0xf]
        %v732 = vld [vmem:[#allocation8 + $0x188] sm:$0xf]
        %v733 = vld [vmem:[#allocation8 + $0x190] sm:$0xf]
        %v734 = vld [vmem:[#allocation8 + $0x198] sm:$0xf]
        %v735 = vld [vmem:[#allocation8 + $0x1a0] sm:$0xf]
        %v736 = vld [vmem:[#allocation8 + $0x1a8] sm:$0xf]
        %v737 = vld [vmem:[#allocation8 + $0x1b0] sm:$0xf]
        %v738 = vld [vmem:[#allocation8 + $0x1b8] sm:$0xf]
        %v739 = vld [vmem:[#allocation8 + $0x1c0] sm:$0xf]
        %v740 = vld [vmem:[#allocation8 + $0x1c8] sm:$0xf]
        %v741 = vld [vmem:[#allocation8 + $0x1d0] sm:$0xf]
        %v742 = vld [vmem:[#allocation8 + $0x1d8] sm:$0xf]
        %v743 = vld [vmem:[#allocation8 + $0x1e0] sm:$0xf]
        %v744 = vld [vmem:[#allocation8 + $0x1e8] sm:$0xf]
        %v745 = vld [vmem:[#allocation8 + $0x1f0] sm:$0xf]
        %v746 = vld [vmem:[#allocation8 + $0x1f8] sm:$0xf]
        %v747 = vpack.c.bf16 %v723, %v723
        %v748 = vld [vmem:[#allocation9 + $0x5] sm:$0x1]
        %v749 = vlaneseq
        %v750 = vshrl.u32 %v749, 7
        %v751 = vsub.s32 0, %v750
        %v752 = vrot.slane %v748, %v751
        %v769 = vunpack.c.l.b16 %v731
        %v770 = vunpack.c.l.b16 %v732
        %v771 = vunpack.c.l.b16 %v733
        %v772 = vunpack.c.l.b16 %v734
        %v773 = vunpack.c.l.b16 %v735
        %v774 = vunpack.c.l.b16 %v736
        %v775 = vunpack.c.l.b16 %v737
        %v776 = vunpack.c.l.b16 %v738
        %v777 = vunpack.c.l.b16 %v739
        %v778 = vunpack.c.l.b16 %v740
        %v779 = vunpack.c.l.b16 %v741
        %v780 = vunpack.c.l.b16 %v742
        %v781 = vunpack.c.l.b16 %v743
        %v782 = vunpack.c.l.b16 %v744
        %v783 = vunpack.c.l.b16 %v745
        %v784 = vunpack.c.l.b16 %v746
        %v785 = vpack.c.b16 %v770, %v769
        %v786 = vpack.c.b16 %v772, %v771
        %v787 = vpack.c.b16 %v774, %v773
        %v788 = vpack.c.b16 %v776, %v775
        %v789 = vpack.c.b16 %v778, %v777
        %v790 = vpack.c.b16 %v780, %v779
        %v791 = vpack.c.b16 %v782, %v781
        %v792 = vpack.c.b16 %v784, %v783
        %801 = vmatprep.subr.bf16.mxu0 0
        %802 = vmatpush1.bf16.msra.mxu0 %v785
        %803 = vmatprep.subr.bf16.mxu0 0
        %804 = vmatpush1.bf16.msra.mxu0 %v786
        %805 = vmatprep.subr.bf16.mxu0 0
        %806 = vmatpush1.bf16.msra.mxu0 %v787
        %807 = vmatprep.subr.bf16.mxu0 0
        %808 = vmatpush1.bf16.msra.mxu0 %v788
        %809 = vmatprep.subr.bf16.mxu0 0
        %810 = vmatpush1.bf16.msra.mxu0 %v789
        %811 = vmatprep.subr.bf16.mxu0 0
        %812 = vmatpush1.bf16.msra.mxu0 %v790
        %813 = vmatprep.subr.bf16.mxu0 0
        %814 = vmatpush1.bf16.msra.mxu0 %v791
        %815 = vmatprep.subr.bf16.mxu0 0
        %816 = vmatpush1.bf16.msra.mxu0 %v792
        %817 = vmatprep.subr.bf16.mxu0 0
        %818 = vmatpush1.bf16.msra.mxu0 0
        %819 = vmatprep.subr.bf16.mxu0 0
        %820 = vmatpush1.bf16.msra.mxu0 0
        %821 = vmatprep.subr.bf16.mxu0 0
        %822 = vmatpush1.bf16.msra.mxu0 0
        %823 = vmatprep.subr.bf16.mxu0 0
        %824 = vmatpush1.bf16.msra.mxu0 0
        %825 = vmatprep.subr.bf16.mxu0 0
        %826 = vmatpush1.bf16.msra.mxu0 0
        %827 = vmatprep.subr.bf16.mxu0 0
        %828 = vmatpush1.bf16.msra.mxu0 0
        %829 = vmatprep.subr.bf16.mxu0 0
        %830 = vmatpush1.bf16.msra.mxu0 0
        %831 = vmatprep.subr.bf16.mxu0 0
        %832 = vmatpush1.bf16.msra.mxu0 0
        %833 = vmatprep.mubr.bf16.mxu0 0
        %834 = vmatmul.mubr.bf16.gmra.mrb[0].mxu0 %v747
        %v835 = vpop.f32.mrb[0].mxu0
        %v836 = vadd.f32 %v752, %v835
        %v837 = vpop.f32.mrb[0].mxu0
        %v838 = vpop.f32.mrb[0].mxu0
        %v839 = vpop.f32.mrb[0].mxu0
        %840 = vdwg.mxu0
        %v841 = vmax.f32 %v836, 0.0
        %v842 = vld [vmem:[#allocation8 + $0x200] sm:$0xf]
        %v843 = vld [vmem:[#allocation8 + $0x208] sm:$0xf]
        %v844 = vld [vmem:[#allocation8 + $0x210] sm:$0xf]
        %v845 = vld [vmem:[#allocation8 + $0x218] sm:$0xf]
        %v846 = vld [vmem:[#allocation8 + $0x220] sm:$0xf]
        %v847 = vld [vmem:[#allocation8 + $0x228] sm:$0xf]
        %v848 = vld [vmem:[#allocation8 + $0x230] sm:$0xf]
        %v849 = vld [vmem:[#allocation8 + $0x238] sm:$0xf]
        %v850 = vld [vmem:[#allocation8 + $0x240] sm:$0xf]
        %v851 = vld [vmem:[#allocation8 + $0x248] sm:$0xf]
        %v852 = vld [vmem:[#allocation8 + $0x250] sm:$0xf]
        %v853 = vld [vmem:[#allocation8 + $0x258] sm:$0xf]
        %v854 = vld [vmem:[#allocation8 + $0x260] sm:$0xf]
        %v855 = vld [vmem:[#allocation8 + $0x268] sm:$0xf]
        %v856 = vld [vmem:[#allocation8 + $0x270] sm:$0xf]
        %v857 = vld [vmem:[#allocation8 + $0x278] sm:$0xf]
        %v858 = vpack.c.bf16 %v841, %v841
        %v859 = vld [vmem:[#allocation9 + $0x6] sm:$0x1]
        %v860 = vlaneseq
        %v861 = vshrl.u32 %v860, 7
        %v862 = vsub.s32 0, %v861
        %v863 = vrot.slane %v859, %v862
        %v880 = vunpack.c.l.b16 %v842
        %v881 = vunpack.c.l.b16 %v843
        %v882 = vunpack.c.l.b16 %v844
        %v883 = vunpack.c.l.b16 %v845
        %v884 = vunpack.c.l.b16 %v846
        %v885 = vunpack.c.l.b16 %v847
        %v886 = vunpack.c.l.b16 %v848
        %v887 = vunpack.c.l.b16 %v849
        %v888 = vunpack.c.l.b16 %v850
        %v889 = vunpack.c.l.b16 %v851
        %v890 = vunpack.c.l.b16 %v852
        %v891 = vunpack.c.l.b16 %v853
        %v892 = vunpack.c.l.b16 %v854
        %v893 = vunpack.c.l.b16 %v855
        %v894 = vunpack.c.l.b16 %v856
        %v895 = vunpack.c.l.b16 %v857
        %v896 = vpack.c.b16 %v881, %v880
        %v897 = vpack.c.b16 %v883, %v882
        %v898 = vpack.c.b16 %v885, %v884
        %v899 = vpack.c.b16 %v887, %v886
        %v900 = vpack.c.b16 %v889, %v888
        %v901 = vpack.c.b16 %v891, %v890
        %v902 = vpack.c.b16 %v893, %v892
        %v903 = vpack.c.b16 %v895, %v894
        %912 = vmatprep.subr.bf16.mxu0 0
        %913 = vmatpush1.bf16.msra.mxu0 %v896
        %914 = vmatprep.subr.bf16.mxu0 0
        %915 = vmatpush1.bf16.msra.mxu0 %v897
        %916 = vmatprep.subr.bf16.mxu0 0
        %917 = vmatpush1.bf16.msra.mxu0 %v898
        %918 = vmatprep.subr.bf16.mxu0 0
        %919 = vmatpush1.bf16.msra.mxu0 %v899
        %920 = vmatprep.subr.bf16.mxu0 0
        %921 = vmatpush1.bf16.msra.mxu0 %v900
        %922 = vmatprep.subr.bf16.mxu0 0
        %923 = vmatpush1.bf16.msra.mxu0 %v901
        %924 = vmatprep.subr.bf16.mxu0 0
        %925 = vmatpush1.bf16.msra.mxu0 %v902
        %926 = vmatprep.subr.bf16.mxu0 0
        %927 = vmatpush1.bf16.msra.mxu0 %v903
        %928 = vmatprep.subr.bf16.mxu0 0
        %929 = vmatpush1.bf16.msra.mxu0 0
        %930 = vmatprep.subr.bf16.mxu0 0
        %931 = vmatpush1.bf16.msra.mxu0 0
        %932 = vmatprep.subr.bf16.mxu0 0
        %933 = vmatpush1.bf16.msra.mxu0 0
        %934 = vmatprep.subr.bf16.mxu0 0
        %935 = vmatpush1.bf16.msra.mxu0 0
        %936 = vmatprep.subr.bf16.mxu0 0
        %937 = vmatpush1.bf16.msra.mxu0 0
        %938 = vmatprep.subr.bf16.mxu0 0
        %939 = vmatpush1.bf16.msra.mxu0 0
        %940 = vmatprep.subr.bf16.mxu0 0
        %941 = vmatpush1.bf16.msra.mxu0 0
        %942 = vmatprep.subr.bf16.mxu0 0
        %943 = vmatpush1.bf16.msra.mxu0 0
        %944 = vmatprep.mubr.bf16.mxu0 0
        %945 = vmatmul.mubr.bf16.gmra.mrb[0].mxu0 %v858
        %v946 = vpop.f32.mrb[0].mxu0
        %v947 = vadd.f32 %v863, %v946
        %v948 = vpop.f32.mrb[0].mxu0
        %v949 = vpop.f32.mrb[0].mxu0
        %v950 = vpop.f32.mrb[0].mxu0
        %951 = vdwg.mxu0
        %v952 = vadd.f32 %v947, %v730
        %953 = vadd.xlane.f32.xlu0 %v952
        %v954 = vpop.xlane.xlu0 %953
        %v955 = vmul.f32 %v954, 0.03125
        %v956 = vmul.f32 %v952, %v952
        %957 = vadd.xlane.f32.xlu0 %v956
        %v958 = vpop.xlane.xlu0 %957
        %v959 = vmul.f32 %v958, 0.03125
        %v960 = vmul.f32 %v955, %v955
        %v961 = vsub.f32 %v959, %v960
        %v962 = vsub.f32 %v952, %v955
        %v963 = vadd.f32 %v961, 1e-05
        %v964 = vrsqrt.pop %v963
        %v965 = vmul.f32 %v962, %v964
        %v966 = vld [vmem:[#allocation9 + $0x7] sm:$0x1]
        %v967 = vlaneseq
        %v968 = vshrl.u32 %v967, 7
        %v969 = vsub.s32 0, %v968
        %v970 = vrot.slane %v966, %v969
        %v971 = vmul.f32 %v965, %v970
        %v972 = vld [vmem:[#allocation9 + $0x8] sm:$0x1]
        %v973 = vlaneseq
        %v974 = vshrl.u32 %v973, 7
        %v975 = vsub.s32 0, %v974
        %v976 = vrot.slane %v972, %v975
        %v977 = vadd.f32 %v971, %v976
        %v978 = vld [vmem:[#allocation8 + $0x280] sm:$0xf]
        %v979 = vld [vmem:[#allocation8 + $0x288] sm:$0xf]
        %v980 = vld [vmem:[#allocation8 + $0x290] sm:$0xf]
        %v981 = vld [vmem:[#allocation8 + $0x298] sm:$0xf]
        %v982 = vld [vmem:[#allocation8 + $0x2a0] sm:$0xf]
        %v983 = vld [vmem:[#allocation8 + $0x2a8] sm:$0xf]
        %v984 = vld [vmem:[#allocation8 + $0x2b0] sm:$0xf]
        %v985 = vld [vmem:[#allocation8 + $0x2b8] sm:$0xf]
        %v986 = vld [vmem:[#allocation8 + $0x2c0] sm:$0xf]
        %v987 = vld [vmem:[#allocation8 + $0x2c8] sm:$0xf]
        %v988 = vld [vmem:[#allocation8 + $0x2d0] sm:$0xf]
        %v989 = vld [vmem:[#allocation8 + $0x2d8] sm:$0xf]
        %v990 = vld [vmem:[#allocation8 + $0x2e0] sm:$0xf]
        %v991 = vld [vmem:[#allocation8 + $0x2e8] sm:$0xf]
        %v992 = vld [vmem:[#allocation8 + $0x2f0] sm:$0xf]
        %v993 = vld [vmem:[#allocation8 + $0x2f8] sm:$0xf]
        %v994 = vpack.c.bf16 %v977, %v977
        %v995 = vld [vmem:[#allocation9 + $0x9] sm:$0x1]
        %v996 = vlaneseq
        %v997 = vshrl.u32 %v996, 7
        %v998 = vsub.s32 0, %v997
        %v999 = vrot.slane %v995, %v998
        %v1016 = vunpack.c.l.b16 %v978
        %v1017 = vunpack.c.l.b16 %v979
        %v1018 = vunpack.c.l.b16 %v980
        %v1019 = vunpack.c.l.b16 %v981
        %v1020 = vunpack.c.l.b16 %v982
        %v1021 = vunpack.c.l.b16 %v983
        %v1022 = vunpack.c.l.b16 %v984
        %v1023 = vunpack.c.l.b16 %v985
        %v1024 = vunpack.c.l.b16 %v986
        %v1025 = vunpack.c.l.b16 %v987
        %v1026 = vunpack.c.l.b16 %v988
        %v1027 = vunpack.c.l.b16 %v989
        %v1028 = vunpack.c.l.b16 %v990
        %v1029 = vunpack.c.l.b16 %v991
        %v1030 = vunpack.c.l.b16 %v992
        %v1031 = vunpack.c.l.b16 %v993
        %v1032 = vpack.c.b16 %v1017, %v1016
        %v1033 = vpack.c.b16 %v1019, %v1018
        %v1034 = vpack.c.b16 %v1021, %v1020
        %v1035 = vpack.c.b16 %v1023, %v1022
        %v1036 = vpack.c.b16 %v1025, %v1024
        %v1037 = vpack.c.b16 %v1027, %v1026
        %v1038 = vpack.c.b16 %v1029, %v1028
        %v1039 = vpack.c.b16 %v1031, %v1030
        %1048 = vmatprep.subr.bf16.mxu0 0
        %1049 = vmatpush1.bf16.msra.mxu0 %v1032
        %1050 = vmatprep.subr.bf16.mxu0 0
        %1051 = vmatpush1.bf16.msra.mxu0 %v1033
        %1052 = vmatprep.subr.bf16.mxu0 0
        %1053 = vmatpush1.bf16.msra.mxu0 %v1034
        %1054 = vmatprep.subr.bf16.mxu0 0
        %1055 = vmatpush1.bf16.msra.mxu0 %v1035
        %1056 = vmatprep.subr.bf16.mxu0 0
        %1057 = vmatpush1.bf16.msra.mxu0 %v1036
        %1058 = vmatprep.subr.bf16.mxu0 0
        %1059 = vmatpush1.bf16.msra.mxu0 %v1037
        %1060 = vmatprep.subr.bf16.mxu0 0
        %1061 = vmatpush1.bf16.msra.mxu0 %v1038
        %1062 = vmatprep.subr.bf16.mxu0 0
        %1063 = vmatpush1.bf16.msra.mxu0 %v1039
        %1064 = vmatprep.subr.bf16.mxu0 0
        %1065 = vmatpush1.bf16.msra.mxu0 0
        %1066 = vmatprep.subr.bf16.mxu0 0
        %1067 = vmatpush1.bf16.msra.mxu0 0
        %1068 = vmatprep.subr.bf16.mxu0 0
        %1069 = vmatpush1.bf16.msra.mxu0 0
        %1070 = vmatprep.subr.bf16.mxu0 0
        %1071 = vmatpush1.bf16.msra.mxu0 0
        %1072 = vmatprep.subr.bf16.mxu0 0
        %1073 = vmatpush1.bf16.msra.mxu0 0
        %1074 = vmatprep.subr.bf16.mxu0 0
        %1075 = vmatpush1.bf16.msra.mxu0 0
        %1076 = vmatprep.subr.bf16.mxu0 0
        %1077 = vmatpush1.bf16.msra.mxu0 0
        %1078 = vmatprep.subr.bf16.mxu0 0
        %1079 = vmatpush1.bf16.msra.mxu0 0
        %1080 = vmatprep.mubr.bf16.mxu0 0
        %1081 = vmatmul.mubr.bf16.gmra.mrb[0].mxu0 %v994
        %v1082 = vpop.f32.mrb[0].mxu0
        %v1083 = vadd.f32 %v999, %v1082
        %v1084 = vpop.f32.mrb[0].mxu0
        %v1085 = vpop.f32.mrb[0].mxu0
        %v1086 = vpop.f32.mrb[0].mxu0
        %1087 = vdwg.mxu0
        %1088 = vadd.xlane.f32.xlu0 %v1083
        %v1089 = vpop.xlane.xlu0 %1088
        %v1090 = vmul.f32 %v1089, 0.03125
        %v1091 = vmul.f32 %v1083, %v1083
        %1092 = vadd.xlane.f32.xlu0 %v1091
        %v1093 = vpop.xlane.xlu0 %1092
        %v1094 = vmul.f32 %v1093, 0.03125
        %v1095 = vmul.f32 %v1090, %v1090
        %v1096 = vsub.f32 %v1094, %v1095
        %v1097 = vsub.f32 %v1083, %v1090
        %v1098 = vadd.f32 %v1096, 1e-05
        %v1099 = vrsqrt.pop %v1098
        %v1100 = vmul.f32 %v1097, %v1099
        %v1101 = vld [vmem:[#allocation9 + $0xa] sm:$0x1]
        %v1102 = vlaneseq
        %v1103 = vshrl.u32 %v1102, 7
        %v1104 = vsub.s32 0, %v1103
        %v1105 = vrot.slane %v1101, %v1104
        %v1106 = vmul.f32 %v1100, %v1105
        %v1107 = vld [vmem:[#allocation9 + $0xb] sm:$0x1]
        %v1108 = vlaneseq
        %v1109 = vshrl.u32 %v1108, 7
        %v1110 = vsub.s32 0, %v1109
        %v1111 = vrot.slane %v1107, %v1110
        %v1112 = vadd.f32 %v1106, %v1111
        %v1113 = vadd.f32 %v305, %v1112
        %1114 = vadd.xlane.f32.xlu0 %v1113
        %v1115 = vpop.xlane.xlu0 %1114
        %v1116 = vmul.f32 %v1115, 0.03125
        %v1117 = vmul.f32 %v1113, %v1113
        %1118 = vadd.xlane.f32.xlu0 %v1117
        %v1119 = vpop.xlane.xlu0 %1118
        %v1120 = vmul.f32 %v1119, 0.03125
        %v1121 = vmul.f32 %v1116, %v1116
        %v1122 = vsub.f32 %v1120, %v1121
        %v1123 = vsub.f32 %v1113, %v1116
        %v1124 = vadd.f32 %v1122, 1e-05
        %v1125 = vrsqrt.pop %v1124
        %v1126 = vmul.f32 %v1123, %v1125
        %v1127 = vld [vmem:[#allocation9 + $0xc] sm:$0x1]
        %v1128 = vlaneseq
        %v1129 = vshrl.u32 %v1128, 7
        %v1130 = vsub.s32 0, %v1129
        %v1131 = vrot.slane %v1127, %v1130
        %v1132 = vmul.f32 %v1126, %v1131
        %v1133 = vld [vmem:[#allocation9 + $0xd] sm:$0x1]
        %v1134 = vlaneseq
        %v1135 = vshrl.u32 %v1134, 7
        %v1136 = vsub.s32 0, %v1135
        %v1137 = vrot.slane %v1133, %v1136
        %v1138 = vadd.f32 %v1132, %v1137
        %v1139 = vld [vmem:[#allocation8 + $0x300] sm:$0xff]
        %v1140 = vld [vmem:[#allocation8 + $0x308] sm:$0xff]
        %v1141 = vld [vmem:[#allocation8 + $0x310] sm:$0xff]
        %v1142 = vld [vmem:[#allocation8 + $0x318] sm:$0xff]
        %v1143 = vld [vmem:[#allocation8 + $0x320] sm:$0xff]
        %v1144 = vld [vmem:[#allocation8 + $0x328] sm:$0xff]
        %v1145 = vld [vmem:[#allocation8 + $0x330] sm:$0xff]
        %v1146 = vld [vmem:[#allocation8 + $0x338] sm:$0xff]
        %v1147 = vld [vmem:[#allocation8 + $0x340] sm:$0xff]
        %v1148 = vld [vmem:[#allocation8 + $0x348] sm:$0xff]
        %v1149 = vld [vmem:[#allocation8 + $0x350] sm:$0xff]
        %v1150 = vld [vmem:[#allocation8 + $0x358] sm:$0xff]
        %v1151 = vld [vmem:[#allocation8 + $0x360] sm:$0xff]
        %v1152 = vld [vmem:[#allocation8 + $0x368] sm:$0xff]
        %v1153 = vld [vmem:[#allocation8 + $0x370] sm:$0xff]
        %v1154 = vld [vmem:[#allocation8 + $0x378] sm:$0xff]
        %v1155 = vpack.c.bf16 %v304, %v304
        %v1156 = vld [vmem:[#allocation8 + $0x380] sm:$0xff]
        %v1157 = vld [vmem:[#allocation8 + $0x388] sm:$0xff]
        %v1158 = vld [vmem:[#allocation8 + $0x390] sm:$0xff]
        %v1159 = vld [vmem:[#allocation8 + $0x398] sm:$0xff]
        %v1160 = vld [vmem:[#allocation8 + $0x3a0] sm:$0xff]
        %v1161 = vld [vmem:[#allocation8 + $0x3a8] sm:$0xff]
        %v1162 = vld [vmem:[#allocation8 + $0x3b0] sm:$0xff]
        %v1163 = vld [vmem:[#allocation8 + $0x3b8] sm:$0xff]
        %v1164 = vld [vmem:[#allocation8 + $0x3c0] sm:$0xff]
        %v1165 = vld [vmem:[#allocation8 + $0x3c8] sm:$0xff]
        %v1166 = vld [vmem:[#allocation8 + $0x3d0] sm:$0xff]
        %v1167 = vld [vmem:[#allocation8 + $0x3d8] sm:$0xff]
        %v1168 = vld [vmem:[#allocation8 + $0x3e0] sm:$0xff]
        %v1169 = vld [vmem:[#allocation8 + $0x3e8] sm:$0xff]
        %v1170 = vld [vmem:[#allocation8 + $0x3f0] sm:$0xff]
        %v1171 = vld [vmem:[#allocation8 + $0x3f8] sm:$0xff]
        %v1172 = vpack.c.bf16 %v1138, %v1138
        %v1189 = vunpack.c.l.b16 %v1156
        %v1190 = vunpack.c.h.b16 %v1156
        %v1191 = vunpack.c.l.b16 %v1157
        %v1192 = vunpack.c.h.b16 %v1157
        %v1193 = vunpack.c.l.b16 %v1158
        %v1194 = vunpack.c.h.b16 %v1158
        %v1195 = vunpack.c.l.b16 %v1159
        %v1196 = vunpack.c.h.b16 %v1159
        %v1197 = vunpack.c.l.b16 %v1160
        %v1198 = vunpack.c.h.b16 %v1160
        %v1199 = vunpack.c.l.b16 %v1161
        %v1200 = vunpack.c.h.b16 %v1161
        %v1201 = vunpack.c.l.b16 %v1162
        %v1202 = vunpack.c.h.b16 %v1162
        %v1203 = vunpack.c.l.b16 %v1163
        %v1204 = vunpack.c.h.b16 %v1163
        %v1205 = vunpack.c.l.b16 %v1164
        %v1206 = vunpack.c.h.b16 %v1164
        %v1207 = vunpack.c.l.b16 %v1165
        %v1208 = vunpack.c.h.b16 %v1165
        %v1209 = vunpack.c.l.b16 %v1166
        %v1210 = vunpack.c.h.b16 %v1166
        %v1211 = vunpack.c.l.b16 %v1167
        %v1212 = vunpack.c.h.b16 %v1167
        %v1213 = vunpack.c.l.b16 %v1168
        %v1214 = vunpack.c.h.b16 %v1168
        %v1215 = vunpack.c.l.b16 %v1169
        %v1216 = vunpack.c.h.b16 %v1169
        %v1217 = vunpack.c.l.b16 %v1170
        %v1218 = vunpack.c.h.b16 %v1170
        %v1219 = vunpack.c.l.b16 %v1171
        %v1220 = vunpack.c.h.b16 %v1171
        %v1221 = vpack.c.b16 %v1191, %v1189
        %v1222 = vpack.c.b16 %v1192, %v1190
        %v1223 = vpack.c.b16 %v1195, %v1193
        %v1224 = vpack.c.b16 %v1196, %v1194
        %v1225 = vpack.c.b16 %v1199, %v1197
        %v1226 = vpack.c.b16 %v1200, %v1198
        %v1227 = vpack.c.b16 %v1203, %v1201
        %v1228 = vpack.c.b16 %v1204, %v1202
        %v1229 = vpack.c.b16 %v1207, %v1205
        %v1230 = vpack.c.b16 %v1208, %v1206
        %v1231 = vpack.c.b16 %v1211, %v1209
        %v1232 = vpack.c.b16 %v1212, %v1210
        %v1233 = vpack.c.b16 %v1215, %v1213
        %v1234 = vpack.c.b16 %v1216, %v1214
        %v1235 = vpack.c.b16 %v1219, %v1217
        %v1236 = vpack.c.b16 %v1220, %v1218
        %1253 = vmatprep.subr.bf16.mxu0 %v1222
        %1254 = vmatpush1.bf16.msra.mxu0 %v1221
        %1255 = vmatprep.subr.bf16.mxu0 %v1224
        %1256 = vmatpush1.bf16.msra.mxu0 %v1223
        %1257 = vmatprep.subr.bf16.mxu0 %v1226
        %1258 = vmatpush1.bf16.msra.mxu0 %v1225
        %1259 = vmatprep.subr.bf16.mxu0 %v1228
        %1260 = vmatpush1.bf16.msra.mxu0 %v1227
        %1261 = vmatprep.subr.bf16.mxu0 %v1230
        %1262 = vmatpush1.bf16.msra.mxu0 %v1229
        %1263 = vmatprep.subr.bf16.mxu0 %v1232
        %1264 = vmatpush1.bf16.msra.mxu0 %v1231
        %1265 = vmatprep.subr.bf16.mxu0 %v1234
        %1266 = vmatpush1.bf16.msra.mxu0 %v1233
        %1267 = vmatprep.subr.bf16.mxu0 %v1236
        %1268 = vmatpush1.bf16.msra.mxu0 %v1235
        %1269 = vmatprep.subr.bf16.mxu0 0
        %1270 = vmatpush1.bf16.msra.mxu0 0
        %1271 = vmatprep.subr.bf16.mxu0 0
        %1272 = vmatpush1.bf16.msra.mxu0 0
        %1273 = vmatprep.subr.bf16.mxu0 0
        %1274 = vmatpush1.bf16.msra.mxu0 0
        %1275 = vmatprep.subr.bf16.mxu0 0
        %1276 = vmatpush1.bf16.msra.mxu0 0
        %1277 = vmatprep.subr.bf16.mxu0 0
        %1278 = vmatpush1.bf16.msra.mxu0 0
        %1279 = vmatprep.subr.bf16.mxu0 0
        %1280 = vmatpush1.bf16.msra.mxu0 0
        %1281 = vmatprep.subr.bf16.mxu0 0
        %1282 = vmatpush1.bf16.msra.mxu0 0
        %1283 = vmatprep.subr.bf16.mxu0 0
        %1284 = vmatpush1.bf16.msra.mxu0 0
        %1285 = vmatprep.mubr.bf16.mxu0 0
        %1286 = vmatmul.mubr.bf16.gmra.mrb[0].mxu0 %v1172
        %v1287 = vpop.f32.mrb[0].mxu0
        %v1288 = vadd.f32 0.0, %v1287
        %v1289 = vpop.f32.mrb[0].mxu0
        %v1290 = vadd.f32 0.0, %v1289
        %v1291 = vpop.f32.mrb[0].mxu0
        %v1292 = vpop.f32.mrb[0].mxu0
        %1293 = vdwg.mxu0
        %v1310 = vunpack.c.l.b16 %v1139
        %v1311 = vunpack.c.h.b16 %v1139
        %v1312 = vunpack.c.l.b16 %v1140
        %v1313 = vunpack.c.h.b16 %v1140
        %v1314 = vunpack.c.l.b16 %v1141
        %v1315 = vunpack.c.h.b16 %v1141
        %v1316 = vunpack.c.l.b16 %v1142
        %v1317 = vunpack.c.h.b16 %v1142
        %v1318 = vunpack.c.l.b16 %v1143
        %v1319 = vunpack.c.h.b16 %v1143
        %v1320 = vunpack.c.l.b16 %v1144
        %v1321 = vunpack.c.h.b16 %v1144
        %v1322 = vunpack.c.l.b16 %v1145
        %v1323 = vunpack.c.h.b16 %v1145
        %v1324 = vunpack.c.l.b16 %v1146
        %v1325 = vunpack.c.h.b16 %v1146
        %v1326 = vunpack.c.l.b16 %v1147
        %v1327 = vunpack.c.h.b16 %v1147
        %v1328 = vunpack.c.l.b16 %v1148
        %v1329 = vunpack.c.h.b16 %v1148
        %v1330 = vunpack.c.l.b16 %v1149
        %v1331 = vunpack.c.h.b16 %v1149
        %v1332 = vunpack.c.l.b16 %v1150
        %v1333 = vunpack.c.h.b16 %v1150
        %v1334 = vunpack.c.l.b16 %v1151
        %v1335 = vunpack.c.h.b16 %v1151
        %v1336 = vunpack.c.l.b16 %v1152
        %v1337 = vunpack.c.h.b16 %v1152
        %v1338 = vunpack.c.l.b16 %v1153
        %v1339 = vunpack.c.h.b16 %v1153
        %v1340 = vunpack.c.l.b16 %v1154
        %v1341 = vunpack.c.h.b16 %v1154
        %v1342 = vpack.c.b16 %v1312, %v1310
        %v1343 = vpack.c.b16 %v1313, %v1311
        %v1344 = vpack.c.b16 %v1316, %v1314
        %v1345 = vpack.c.b16 %v1317, %v1315
        %v1346 = vpack.c.b16 %v1320, %v1318
        %v1347 = vpack.c.b16 %v1321, %v1319
        %v1348 = vpack.c.b16 %v1324, %v1322
        %v1349 = vpack.c.b16 %v1325, %v1323
        %v1350 = vpack.c.b16 %v1328, %v1326
        %v1351 = vpack.c.b16 %v1329, %v1327
        %v1352 = vpack.c.b16 %v1332, %v1330
        %v1353 = vpack.c.b16 %v1333, %v1331
        %v1354 = vpack.c.b16 %v1336, %v1334
        %v1355 = vpack.c.b16 %v1337, %v1335
        %v1356 = vpack.c.b16 %v1340, %v1338
        %v1357 = vpack.c.b16 %v1341, %v1339
        %1374 = vmatprep.subr.bf16.mxu0 %v1343
        %1375 = vmatpush1.bf16.msra.mxu0 %v1342
        %1376 = vmatprep.subr.bf16.mxu0 %v1345
        %1377 = vmatpush1.bf16.msra.mxu0 %v1344
        %1378 = vmatprep.subr.bf16.mxu0 %v1347
        %1379 = vmatpush1.bf16.msra.mxu0 %v1346
        %1380 = vmatprep.subr.bf16.mxu0 %v1349
        %1381 = vmatpush1.bf16.msra.mxu0 %v1348
        %1382 = vmatprep.subr.bf16.mxu0 %v1351
        %1383 = vmatpush1.bf16.msra.mxu0 %v1350
        %1384 = vmatprep.subr.bf16.mxu0 %v1353
        %1385 = vmatpush1.bf16.msra.mxu0 %v1352
        %1386 = vmatprep.subr.bf16.mxu0 %v1355
        %1387 = vmatpush1.bf16.msra.mxu0 %v1354
        %1388 = vmatprep.subr.bf16.mxu0 %v1357
        %1389 = vmatpush1.bf16.msra.mxu0 %v1356
        %1390 = vmatprep.subr.bf16.mxu0 0
        %1391 = vmatpush1.bf16.msra.mxu0 0
        %1392 = vmatprep.subr.bf16.mxu0 0
        %1393 = vmatpush1.bf16.msra.mxu0 0
        %1394 = vmatprep.subr.bf16.mxu0 0
        %1395 = vmatpush1.bf16.msra.mxu0 0
        %1396 = vmatprep.subr.bf16.mxu0 0
        %1397 = vmatpush1.bf16.msra.mxu0 0
        %1398 = vmatprep.subr.bf16.mxu0 0
        %1399 = vmatpush1.bf16.msra.mxu0 0
        %1400 = vmatprep.subr.bf16.mxu0 0
        %1401 = vmatpush1.bf16.msra.mxu0 0
        %1402 = vmatprep.subr.bf16.mxu0 0
        %1403 = vmatpush1.bf16.msra.mxu0 0
        %1404 = vmatprep.subr.bf16.mxu0 0
        %1405 = vmatpush1.bf16.msra.mxu0 0
        %1406 = vmatprep.mubr.bf16.mxu0 0
        %1407 = vmatmul.mubr.bf16.gmra.mrb[0].mxu0 %v1155
        %v1408 = vpop.f32.mrb[0].mxu0
        %v1409 = vadd.f32 %v1288, %v1408
        %v1410 = vpop.f32.mrb[0].mxu0
        %v1411 = vadd.f32 %v1290, %v1410
        %v1412 = vpop.f32.mrb[0].mxu0
        %v1413 = vpop.f32.mrb[0].mxu0
        %1414 = vdwg.mxu0
        %v1415 = vld [vmem:[#allocation9 + $0xe] sm:$0x1]
        %v1416 = vlaneseq
        %v1417 = vshrl.u32 %v1416, 7
        %v1418 = vsub.s32 0, %v1417
        %v1419 = vrot.slane %v1415, %v1418
        %v1420 = vadd.f32 %v1409, %v1419
        %v1421 = vmax.f32 %v1420, 0.0
        %v1422 = vld [vmem:[#allocation9 + $0xf] sm:$0x1]
        %v1423 = vlaneseq
        %v1424 = vshrl.u32 %v1423, 7
        %v1425 = vsub.s32 0, %v1424
        %v1426 = vrot.slane %v1422, %v1425
        %v1427 = vadd.f32 %v1411, %v1426
        %v1428 = vmax.f32 %v1427, 0.0
        %v1429 = vld [vmem:[#allocation8 + $0x400] sm:$0xf]
        %v1430 = vld [vmem:[#allocation8 + $0x408] sm:$0xf]
        %v1431 = vld [vmem:[#allocation8 + $0x410] sm:$0xf]
        %v1432 = vld [vmem:[#allocation8 + $0x418] sm:$0xf]
        %v1433 = vld [vmem:[#allocation8 + $0x420] sm:$0xf]
        %v1434 = vld [vmem:[#allocation8 + $0x428] sm:$0xf]
        %v1435 = vld [vmem:[#allocation8 + $0x430] sm:$0xf]
        %v1436 = vld [vmem:[#allocation8 + $0x438] sm:$0xf]
        %v1437 = vld [vmem:[#allocation8 + $0x440] sm:$0xf]
        %v1438 = vld [vmem:[#allocation8 + $0x448] sm:$0xf]
        %v1439 = vld [vmem:[#allocation8 + $0x450] sm:$0xf]
        %v1440 = vld [vmem:[#allocation8 + $0x458] sm:$0xf]
        %v1441 = vld [vmem:[#allocation8 + $0x460] sm:$0xf]
        %v1442 = vld [vmem:[#allocation8 + $0x468] sm:$0xf]
        %v1443 = vld [vmem:[#allocation8 + $0x470] sm:$0xf]
        %v1444 = vld [vmem:[#allocation8 + $0x478] sm:$0xf]
        %v1445 = vpack.c.bf16 %v1421, %v1421
        %v1446 = vld [vmem:[#allocation9 + $0x10] sm:$0x1]
        %v1447 = vlaneseq
        %v1448 = vshrl.u32 %v1447, 7
        %v1449 = vsub.s32 0, %v1448
        %v1450 = vrot.slane %v1446, %v1449
        %v1467 = vunpack.c.l.b16 %v1429
        %v1468 = vunpack.c.l.b16 %v1430
        %v1469 = vunpack.c.l.b16 %v1431
        %v1470 = vunpack.c.l.b16 %v1432
        %v1471 = vunpack.c.l.b16 %v1433
        %v1472 = vunpack.c.l.b16 %v1434
        %v1473 = vunpack.c.l.b16 %v1435
        %v1474 = vunpack.c.l.b16 %v1436
        %v1475 = vunpack.c.l.b16 %v1437
        %v1476 = vunpack.c.l.b16 %v1438
        %v1477 = vunpack.c.l.b16 %v1439
        %v1478 = vunpack.c.l.b16 %v1440
        %v1479 = vunpack.c.l.b16 %v1441
        %v1480 = vunpack.c.l.b16 %v1442
        %v1481 = vunpack.c.l.b16 %v1443
        %v1482 = vunpack.c.l.b16 %v1444
        %v1483 = vpack.c.b16 %v1468, %v1467
        %v1484 = vpack.c.b16 %v1470, %v1469
        %v1485 = vpack.c.b16 %v1472, %v1471
        %v1486 = vpack.c.b16 %v1474, %v1473
        %v1487 = vpack.c.b16 %v1476, %v1475
        %v1488 = vpack.c.b16 %v1478, %v1477
        %v1489 = vpack.c.b16 %v1480, %v1479
        %v1490 = vpack.c.b16 %v1482, %v1481
        %1499 = vmatprep.subr.bf16.mxu0 0
        %1500 = vmatpush1.bf16.msra.mxu0 %v1483
        %1501 = vmatprep.subr.bf16.mxu0 0
        %1502 = vmatpush1.bf16.msra.mxu0 %v1484
        %1503 = vmatprep.subr.bf16.mxu0 0
        %1504 = vmatpush1.bf16.msra.mxu0 %v1485
        %1505 = vmatprep.subr.bf16.mxu0 0
        %1506 = vmatpush1.bf16.msra.mxu0 %v1486
        %1507 = vmatprep.subr.bf16.mxu0 0
        %1508 = vmatpush1.bf16.msra.mxu0 %v1487
        %1509 = vmatprep.subr.bf16.mxu0 0
        %1510 = vmatpush1.bf16.msra.mxu0 %v1488
        %1511 = vmatprep.subr.bf16.mxu0 0
        %1512 = vmatpush1.bf16.msra.mxu0 %v1489
        %1513 = vmatprep.subr.bf16.mxu0 0
        %1514 = vmatpush1.bf16.msra.mxu0 %v1490
        %1515 = vmatprep.subr.bf16.mxu0 0
        %1516 = vmatpush1.bf16.msra.mxu0 0
        %1517 = vmatprep.subr.bf16.mxu0 0
        %1518 = vmatpush1.bf16.msra.mxu0 0
        %1519 = vmatprep.subr.bf16.mxu0 0
        %1520 = vmatpush1.bf16.msra.mxu0 0
        %1521 = vmatprep.subr.bf16.mxu0 0
        %1522 = vmatpush1.bf16.msra.mxu0 0
        %1523 = vmatprep.subr.bf16.mxu0 0
        %1524 = vmatpush1.bf16.msra.mxu0 0
        %1525 = vmatprep.subr.bf16.mxu0 0
        %1526 = vmatpush1.bf16.msra.mxu0 0
        %1527 = vmatprep.subr.bf16.mxu0 0
        %1528 = vmatpush1.bf16.msra.mxu0 0
        %1529 = vmatprep.subr.bf16.mxu0 0
        %1530 = vmatpush1.bf16.msra.mxu0 0
        %1531 = vmatprep.mubr.bf16.mxu0 0
        %1532 = vmatmul.mubr.bf16.gmra.mrb[0].mxu0 %v1445
        %v1533 = vpop.f32.mrb[0].mxu0
        %v1534 = vadd.f32 %v1450, %v1533
        %v1535 = vpop.f32.mrb[0].mxu0
        %v1536 = vpop.f32.mrb[0].mxu0
        %v1537 = vpop.f32.mrb[0].mxu0
        %1538 = vdwg.mxu0
        %v1539 = vmax.f32 %v1534, 0.0
        %v1540 = vld [vmem:[#allocation8 + $0x480] sm:$0xf]
        %v1541 = vld [vmem:[#allocation8 + $0x488] sm:$0xf]
        %v1542 = vld [vmem:[#allocation8 + $0x490] sm:$0xf]
        %v1543 = vld [vmem:[#allocation8 + $0x498] sm:$0xf]
        %v1544 = vld [vmem:[#allocation8 + $0x4a0] sm:$0xf]
        %v1545 = vld [vmem:[#allocation8 + $0x4a8] sm:$0xf]
        %v1546 = vld [vmem:[#allocation8 + $0x4b0] sm:$0xf]
        %v1547 = vld [vmem:[#allocation8 + $0x4b8] sm:$0xf]
        %v1548 = vld [vmem:[#allocation8 + $0x4c0] sm:$0xf]
        %v1549 = vld [vmem:[#allocation8 + $0x4c8] sm:$0xf]
        %v1550 = vld [vmem:[#allocation8 + $0x4d0] sm:$0xf]
        %v1551 = vld [vmem:[#allocation8 + $0x4d8] sm:$0xf]
        %v1552 = vld [vmem:[#allocation8 + $0x4e0] sm:$0xf]
        %v1553 = vld [vmem:[#allocation8 + $0x4e8] sm:$0xf]
        %v1554 = vld [vmem:[#allocation8 + $0x4f0] sm:$0xf]
        %v1555 = vld [vmem:[#allocation8 + $0x4f8] sm:$0xf]
        %v1556 = vpack.c.bf16 %v1539, %v1539
        %v1557 = vld [vmem:[#allocation9 + $0x11] sm:$0x1]
        %v1558 = vlaneseq
        %v1559 = vshrl.u32 %v1558, 7
        %v1560 = vsub.s32 0, %v1559
        %v1561 = vrot.slane %v1557, %v1560
        %v1578 = vunpack.c.l.b16 %v1540
        %v1579 = vunpack.c.l.b16 %v1541
        %v1580 = vunpack.c.l.b16 %v1542
        %v1581 = vunpack.c.l.b16 %v1543
        %v1582 = vunpack.c.l.b16 %v1544
        %v1583 = vunpack.c.l.b16 %v1545
        %v1584 = vunpack.c.l.b16 %v1546
        %v1585 = vunpack.c.l.b16 %v1547
        %v1586 = vunpack.c.l.b16 %v1548
        %v1587 = vunpack.c.l.b16 %v1549
        %v1588 = vunpack.c.l.b16 %v1550
        %v1589 = vunpack.c.l.b16 %v1551
        %v1590 = vunpack.c.l.b16 %v1552
        %v1591 = vunpack.c.l.b16 %v1553
        %v1592 = vunpack.c.l.b16 %v1554
        %v1593 = vunpack.c.l.b16 %v1555
        %v1594 = vpack.c.b16 %v1579, %v1578
        %v1595 = vpack.c.b16 %v1581, %v1580
        %v1596 = vpack.c.b16 %v1583, %v1582
        %v1597 = vpack.c.b16 %v1585, %v1584
        %v1598 = vpack.c.b16 %v1587, %v1586
        %v1599 = vpack.c.b16 %v1589, %v1588
        %v1600 = vpack.c.b16 %v1591, %v1590
        %v1601 = vpack.c.b16 %v1593, %v1592
        %1610 = vmatprep.subr.bf16.mxu0 0
        %1611 = vmatpush1.bf16.msra.mxu0 %v1594
        %1612 = vmatprep.subr.bf16.mxu0 0
        %1613 = vmatpush1.bf16.msra.mxu0 %v1595
        %1614 = vmatprep.subr.bf16.mxu0 0
        %1615 = vmatpush1.bf16.msra.mxu0 %v1596
        %1616 = vmatprep.subr.bf16.mxu0 0
        %1617 = vmatpush1.bf16.msra.mxu0 %v1597
        %1618 = vmatprep.subr.bf16.mxu0 0
        %1619 = vmatpush1.bf16.msra.mxu0 %v1598
        %1620 = vmatprep.subr.bf16.mxu0 0
        %1621 = vmatpush1.bf16.msra.mxu0 %v1599
        %1622 = vmatprep.subr.bf16.mxu0 0
        %1623 = vmatpush1.bf16.msra.mxu0 %v1600
        %1624 = vmatprep.subr.bf16.mxu0 0
        %1625 = vmatpush1.bf16.msra.mxu0 %v1601
        %1626 = vmatprep.subr.bf16.mxu0 0
        %1627 = vmatpush1.bf16.msra.mxu0 0
        %1628 = vmatprep.subr.bf16.mxu0 0
        %1629 = vmatpush1.bf16.msra.mxu0 0
        %1630 = vmatprep.subr.bf16.mxu0 0
        %1631 = vmatpush1.bf16.msra.mxu0 0
        %1632 = vmatprep.subr.bf16.mxu0 0
        %1633 = vmatpush1.bf16.msra.mxu0 0
        %1634 = vmatprep.subr.bf16.mxu0 0
        %1635 = vmatpush1.bf16.msra.mxu0 0
        %1636 = vmatprep.subr.bf16.mxu0 0
        %1637 = vmatpush1.bf16.msra.mxu0 0
        %1638 = vmatprep.subr.bf16.mxu0 0
        %1639 = vmatpush1.bf16.msra.mxu0 0
        %1640 = vmatprep.subr.bf16.mxu0 0
        %1641 = vmatpush1.bf16.msra.mxu0 0
        %1642 = vmatprep.mubr.bf16.mxu0 0
        %1643 = vmatmul.mubr.bf16.gmra.mrb[0].mxu0 %v1556
        %v1644 = vpop.f32.mrb[0].mxu0
        %v1645 = vadd.f32 %v1561, %v1644
        %v1646 = vpop.f32.mrb[0].mxu0
        %v1647 = vpop.f32.mrb[0].mxu0
        %v1648 = vpop.f32.mrb[0].mxu0
        %1649 = vdwg.mxu0
        %v1650 = vadd.f32 %v1645, %v1428
        %1651 = vadd.xlane.f32.xlu0 %v1650
        %v1652 = vpop.xlane.xlu0 %1651
        %v1653 = vmul.f32 %v1652, 0.015625
        %v1654 = vmul.f32 %v1650, %v1650
        %1655 = vadd.xlane.f32.xlu0 %v1654
        %v1656 = vpop.xlane.xlu0 %1655
        %v1657 = vmul.f32 %v1656, 0.015625
        %v1658 = vmul.f32 %v1653, %v1653
        %v1659 = vsub.f32 %v1657, %v1658
        %v1660 = vsub.f32 %v1650, %v1653
        %v1661 = vadd.f32 %v1659, 1e-05
        %v1662 = vrsqrt.pop %v1661
        %v1663 = vmul.f32 %v1660, %v1662
        %v1664 = vld [vmem:[#allocation9 + $0x12] sm:$0x1]
        %v1665 = vlaneseq
        %v1666 = vshrl.u32 %v1665, 7
        %v1667 = vsub.s32 0, %v1666
        %v1668 = vrot.slane %v1664, %v1667
        %v1669 = vmul.f32 %v1663, %v1668
        %v1670 = vld [vmem:[#allocation9 + $0x13] sm:$0x1]
        %v1671 = vlaneseq
        %v1672 = vshrl.u32 %v1671, 7
        %v1673 = vsub.s32 0, %v1672
        %v1674 = vrot.slane %v1670, %v1673
        %v1675 = vadd.f32 %v1669, %v1674
        %v1676 = vld [vmem:[#allocation8 + $0x500] sm:$0xf]
        %v1677 = vld [vmem:[#allocation8 + $0x508] sm:$0xf]
        %v1678 = vld [vmem:[#allocation8 + $0x510] sm:$0xf]
        %v1679 = vld [vmem:[#allocation8 + $0x518] sm:$0xf]
        %v1680 = vld [vmem:[#allocation8 + $0x520] sm:$0xf]
        %v1681 = vld [vmem:[#allocation8 + $0x528] sm:$0xf]
        %v1682 = vld [vmem:[#allocation8 + $0x530] sm:$0xf]
        %v1683 = vld [vmem:[#allocation8 + $0x538] sm:$0xf]
        %v1684 = vld [vmem:[#allocation8 + $0x540] sm:$0xf]
        %v1685 = vld [vmem:[#allocation8 + $0x548] sm:$0xf]
        %v1686 = vld [vmem:[#allocation8 + $0x550] sm:$0xf]
        %v1687 = vld [vmem:[#allocation8 + $0x558] sm:$0xf]
        %v1688 = vld [vmem:[#allocation8 + $0x560] sm:$0xf]
        %v1689 = vld [vmem:[#allocation8 + $0x568] sm:$0xf]
        %v1690 = vld [vmem:[#allocation8 + $0x570] sm:$0xf]
        %v1691 = vld [vmem:[#allocation8 + $0x578] sm:$0xf]
        %v1692 = vpack.c.bf16 %v1675, %v1675
        %v1693 = vld [vmem:[#allocation9 + $0x14] sm:$0x1]
        %v1694 = vlaneseq
        %v1695 = vshrl.u32 %v1694, 7
        %v1696 = vsub.s32 0, %v1695
        %v1697 = vrot.slane %v1693, %v1696
        %v1714 = vunpack.c.l.b16 %v1676
        %v1715 = vunpack.c.l.b16 %v1677
        %v1716 = vunpack.c.l.b16 %v1678
        %v1717 = vunpack.c.l.b16 %v1679
        %v1718 = vunpack.c.l.b16 %v1680
        %v1719 = vunpack.c.l.b16 %v1681
        %v1720 = vunpack.c.l.b16 %v1682
        %v1721 = vunpack.c.l.b16 %v1683
        %v1722 = vunpack.c.l.b16 %v1684
        %v1723 = vunpack.c.l.b16 %v1685
        %v1724 = vunpack.c.l.b16 %v1686
        %v1725 = vunpack.c.l.b16 %v1687
        %v1726 = vunpack.c.l.b16 %v1688
        %v1727 = vunpack.c.l.b16 %v1689
        %v1728 = vunpack.c.l.b16 %v1690
        %v1729 = vunpack.c.l.b16 %v1691
        %v1730 = vpack.c.b16 %v1715, %v1714
        %v1731 = vpack.c.b16 %v1717, %v1716
        %v1732 = vpack.c.b16 %v1719, %v1718
        %v1733 = vpack.c.b16 %v1721, %v1720
        %v1734 = vpack.c.b16 %v1723, %v1722
        %v1735 = vpack.c.b16 %v1725, %v1724
        %v1736 = vpack.c.b16 %v1727, %v1726
        %v1737 = vpack.c.b16 %v1729, %v1728
        %1746 = vmatprep.subr.bf16.mxu0 0
        %1747 = vmatpush1.bf16.msra.mxu0 %v1730
        %1748 = vmatprep.subr.bf16.mxu0 0
        %1749 = vmatpush1.bf16.msra.mxu0 %v1731
        %1750 = vmatprep.subr.bf16.mxu0 0
        %1751 = vmatpush1.bf16.msra.mxu0 %v1732
        %1752 = vmatprep.subr.bf16.mxu0 0
        %1753 = vmatpush1.bf16.msra.mxu0 %v1733
        %1754 = vmatprep.subr.bf16.mxu0 0
        %1755 = vmatpush1.bf16.msra.mxu0 %v1734
        %1756 = vmatprep.subr.bf16.mxu0 0
        %1757 = vmatpush1.bf16.msra.mxu0 %v1735
        %1758 = vmatprep.subr.bf16.mxu0 0
        %1759 = vmatpush1.bf16.msra.mxu0 %v1736
        %1760 = vmatprep.subr.bf16.mxu0 0
        %1761 = vmatpush1.bf16.msra.mxu0 %v1737
        %1762 = vmatprep.subr.bf16.mxu0 0
        %1763 = vmatpush1.bf16.msra.mxu0 0
        %1764 = vmatprep.subr.bf16.mxu0 0
        %1765 = vmatpush1.bf16.msra.mxu0 0
        %1766 = vmatprep.subr.bf16.mxu0 0
        %1767 = vmatpush1.bf16.msra.mxu0 0
        %1768 = vmatprep.subr.bf16.mxu0 0
        %1769 = vmatpush1.bf16.msra.mxu0 0
        %1770 = vmatprep.subr.bf16.mxu0 0
        %1771 = vmatpush1.bf16.msra.mxu0 0
        %1772 = vmatprep.subr.bf16.mxu0 0
        %1773 = vmatpush1.bf16.msra.mxu0 0
        %1774 = vmatprep.subr.bf16.mxu0 0
        %1775 = vmatpush1.bf16.msra.mxu0 0
        %1776 = vmatprep.subr.bf16.mxu0 0
        %1777 = vmatpush1.bf16.msra.mxu0 0
        %1778 = vmatprep.mubr.bf16.mxu0 0
        %1779 = vmatmul.mubr.bf16.gmra.mrb[0].mxu0 %v1692
        %v1780 = vpop.f32.mrb[0].mxu0
        %v1781 = vadd.f32 %v1697, %v1780
        %v1782 = vpop.f32.mrb[0].mxu0
        %v1783 = vpop.f32.mrb[0].mxu0
        %v1784 = vpop.f32.mrb[0].mxu0
        %1785 = vdwg.mxu0
        %v1786 = vlaneseq
        %v1787 = vand.u32 %v1786, 127
        %vm1788 = vcmp.lt.s32.totalorder %v1787, 48
        %v1789 = vtanh.pop %v1781
        %v1790 = vsel %vm1788, %v1789, %v1781
        %1791 = vst [vmem:[#allocation2] sm:$0xff] %v1138
        %1792 = vst [vmem:[%s287] sm:$0xff] %v1790
        %1793 = vst [vmem:[%s294] sm:$0xff] %v1138
        %s1794 = sand.u32 %s125, 1
        %s1795 = scalar_lea.sflag [#allocation5], %s1794
        %s1796 = sand.u32 %s125, 1
        %s1797 = smul.addr %s1796, 8
        %s1798 = scalar_lea.vmem [#allocation11], %s1797
        %s1799 = sand.u32 %s151, 1
        %s1800 = scalar_lea.sflag [#allocation13], %s1799
        %s1801 = sand.u32 %s151, 1
        %s1802 = smul.addr %s1801, 8
        %s1803 = scalar_lea.vmem [#allocation12], %s1802
        // Predicated region
        $region57: #{tpu_custom_call.1} parent=35 // pred_check
          %p1804 = pneg %p135
        $region58: #{tpu_custom_call.1} parent=35 // pred_check_branch
          %1806 = sbr.rel (%p1804) target = $region60
        $region59: #{tpu_custom_call.1} parent=35 // pred_region
          %s1808 = ssub.s32 128, 128
          %1809 = vsyncadd %s1795, %s1808
          %s1810 = smul.addr %s28, 128
          %s1811 = scalar_lea.hbm %s4, %s1810
          %s1813 = sshll.u32 %s1798, 4
          %s1814 = int_to_ptr.vmem [resolvable:$true] %s1813
          %1816 = dma.vmem_to_hbm [thread:$0]  %s1814, 128, %s1811, %s1795
        $region60: #{tpu_custom_call.1} parent=35 // pred_fallthru
          _
        // Predicated region
        $region61: #{tpu_custom_call.1} parent=35 // pred_check
          %p1817 = pneg %p161
        $region62: #{tpu_custom_call.1} parent=35 // pred_check_branch
          %1819 = sbr.rel (%p1817) target = $region64
        $region63: #{tpu_custom_call.1} parent=35 // pred_region
          %s1821 = ssub.s32 128, 128
          %1822 = vsyncadd %s1800, %s1821
          %s1823 = smul.addr %s28, 128
          %s1824 = scalar_lea.hbm %s5, %s1823
          %s1826 = sshll.u32 %s1803, 4
          %s1827 = int_to_ptr.vmem [resolvable:$true] %s1826
          %1829 = dma.vmem_to_hbm [thread:$0]  %s1827, 128, %s1824, %s1800
        $region64: #{tpu_custom_call.1} parent=35 // pred_fallthru
          _
      $region36: #{tpu_custom_call.1} parent=5 // pred_fallthru
        _
      %p1830 = scmp.le.s32.totalorder 2, %s23
      // Predicated region
      $region65: #{tpu_custom_call.1} parent=5 // pred_check
        %p1831 = pneg %p1830
      $region66: #{tpu_custom_call.1} parent=5 // pred_check_branch
        %1833 = sbr.rel (%p1831) target = $region68
      $region67: #{tpu_custom_call.1} parent=5 // pred_region
        %s1834 = ssub.s32 %s23, 2
        // Predicated region
        $region69: #{tpu_custom_call.1} parent=67 // pred_check
          %p1835 = pneg %p141
        $region70: #{tpu_custom_call.1} parent=67 // pred_check_branch
          %1837 = sbr.rel (%p1835) target = $region72
        $region71: #{tpu_custom_call.1} parent=67 // pred_region
          %s1838 = sand.u32 %s126, 1
          %s1839 = scalar_lea.sflag [#allocation5], %s1838
          %s1840 = sand.u32 %s126, 1
          %s1841 = smul.addr %s1840, 8
          %s1842 = scalar_lea.vmem [#allocation11], %s1841
          %1843 = dma.done %s1839, 128
        $region72: #{tpu_custom_call.1} parent=67 // pred_fallthru
          _
        // Predicated region
        $region73: #{tpu_custom_call.1} parent=67 // pred_check
          %p1844 = pneg %p167
        $region74: #{tpu_custom_call.1} parent=67 // pred_check_branch
          %1846 = sbr.rel (%p1844) target = $region76
        $region75: #{tpu_custom_call.1} parent=67 // pred_region
          %s1847 = sand.u32 %s152, 1
          %s1848 = scalar_lea.sflag [#allocation13], %s1847
          %s1849 = sand.u32 %s152, 1
          %s1850 = smul.addr %s1849, 8
          %s1851 = scalar_lea.vmem [#allocation12], %s1850
          %1852 = dma.done %s1848, 128
        $region76: #{tpu_custom_call.1} parent=67 // pred_fallthru
          _
      $region68: #{tpu_custom_call.1} parent=5 // pred_fallthru
        _
    $region6: #{tpu_custom_call.1} parent=1 // loop_footer
      %s27 = sadd.s32 1, %s23
    $region7: #{tpu_custom_call.1} parent=1 // loop_footer_branch
      %22 = sbr.rel target = $region3
    $region8: #{tpu_custom_call.1} parent=1 // loop_exit
      _
    %1853 = vsyncpa [#allocation4], 1
    %s1854 = scalar_lea.sflag [#allocation4], 1
    %1855 = vsyncpa %s1854, 1
    %1856 = vsyncpa [#allocation7], 1
    %1857 = vsyncpa [#allocation10], 1
    %1858 = vsyncpa [#allocation5], 1
    %s1859 = scalar_lea.sflag [#allocation5], 1
    %1860 = vsyncpa %s1859, 1
    %1861 = vsyncpa [#allocation13], 1
    %s1862 = scalar_lea.sflag [#allocation13], 1
    %1863 = vsyncpa %s1862, 1

</llo_original>
